<compile_context>
chip_gen: v5e
topology: v5e:2x2
jax: 0.10.0
libtpu: 0.0.40
codegen_flags: <defaults>
</compile_context>

<pallas_src>
import functools
import math

import jax
import jax.numpy as jnp
from jax.experimental import pallas as pl
from jax.experimental.pallas import tpu as pltpu


def _round_up(x, m):
    return ((x + m - 1) // m) * m


# ----------------------------- Pallas kernel ------------------------------ #

def _lattice_lstm_kernel(wf_in_ref, wf_cnt_ref, wf_ign_ref,      # SMEM schedule
                         h0c0_ref, pre_ref, whh_ref,             # VMEM inputs
                         state_ref,                              # VMEM output (resident)
                         src_ref,                                # VMEM scratch
                         *, m8, max_in, hp, zero_row, init_row):
    """One wavefront (topological depth): gather+mean source states for all M8
    edge slots, one (M8,Hp)@(Hp,4*Hp) MXU matmul, vectorized LSTM gates, and a
    contiguous 8-row-aligned block store into the fused [h|c] state buffer.

    Gate order [i, f, g, o] matches torch.nn.LSTMCell; bias already folded into
    the pre-computed pre-gates.
    """
    t = pl.program_id(0)

    @pl.when(t == 0)
    def _init():
        # Zero the 8 tail rows (zero-gather row, init row, spare padding rows),
        # then place the initial [h0 | c0] state into its dedicated row.
        state_ref[pl.ds(zero_row, 8), :] = jnp.zeros((8, 2 * hp), jnp.float32)
        state_ref[pl.ds(init_row, 1), :] = h0c0_ref[...]

    # ---- gather & mean-combine source-node states for this wavefront -------
    # Padded gather indices point at the always-zero row, so this is a plain
    # unrolled accumulate (no per-element selects on the VALU).
    for m in range(m8):
        slot = t * m8 + m
        acc = jnp.zeros((1, 2 * hp), jnp.float32)
        for k in range(max_in):
            idx = wf_in_ref[slot * max_in + k]
            acc = acc + state_ref[pl.ds(idx, 1), :]
        inv = 1.0 / wf_cnt_ref[slot].astype(jnp.float32)
        src_ref[pl.ds(m, 1), :] = acc * inv

    src = src_ref[...]                       # (M8, 2*Hp) fused [h | c] sources
    h_src = src[:, :hp]
    c_src = src[:, hp:]

    # ---- batched LSTM cell step (W_hh resident in VMEM; pre-gates streamed) --
    gates = pre_ref[...] + jnp.dot(h_src, whh_ref[...],
                                   preferred_element_type=jnp.float32)
    i_g = jax.nn.sigmoid(gates[:, 0 * hp:1 * hp])     # 128-lane aligned slices
    f_g = jax.nn.sigmoid(gates[:, 1 * hp:2 * hp])
    g_g = jnp.tanh(gates[:, 2 * hp:3 * hp])
    o_g = jax.nn.sigmoid(gates[:, 3 * hp:4 * hp])
    c_new = f_g * c_src + i_g * g_g
    h_new = o_g * jnp.tanh(c_new)
    new = jnp.concatenate([h_new, c_new], axis=1)     # (M8, 2*Hp)

    # lattice.ignore edges pass the source state straight through.
    iota = jax.lax.broadcasted_iota(jnp.int32, (m8, 1), 0)
    ign = jnp.zeros((m8, 1), jnp.int32)
    for m in range(m8):
        ign = jnp.where(iota == m, wf_ign_ref[t * m8 + m], ign)
    out = jnp.where(ign != 0, src, new)

    base = pl.multiple_of(t * m8, 8)                  # contiguous, aligned store
    state_ref[pl.ds(base, m8), :] = out


def lattice_lstm_pallas(cell, feats, h0c0, sched):
    """Run one (layer, direction) lattice traversal in one pallas_call.

    Returns (edge_hidden, edge_cell), each (edge_num, H) float32.
    """
    E, F = feats.shape
    H = cell["whh"].shape[0]
    Hp = _round_up(H, 128)
    D = sched["num_depths"]
    M8 = sched["m8"]
    max_in = sched["max_in"]
    rows_total = sched["rows_total"]

    # Hoisted dense input projection (one (E,F)@(F,4H) matmul, bias folded in),
    # padded so each of the 4 gates starts on a 128-lane boundary, then
    # permuted into wavefront-schedule order so the kernel can stream it.
    pre = feats.astype(jnp.float32) @ cell["wih"] + cell["b"]          # (E, 4H)
    pre = jnp.pad(pre.reshape(E, 4, H),
                  ((0, 0), (0, 0), (0, Hp - H))).reshape(E, 4 * Hp)
    pre_sched = pre[sched["wf_edge"]]                                  # (D*M8, 4*Hp)

    whh = jnp.pad(cell["whh"].reshape(H, 4, H),
                  ((0, Hp - H), (0, 0), (0, Hp - H))).reshape(Hp, 4 * Hp)

    h0 = jnp.pad(h0c0[0:1], ((0, 0), (0, Hp - H)))
    c0 = jnp.pad(h0c0[1:2], ((0, 0), (0, Hp - H)))
    h0c0_p = jnp.concatenate([h0, c0], axis=1)                         # (1, 2*Hp)

    const = lambda d, *pf: (0, 0)        # whole-array blocks, VMEM-resident
    grid_spec = pltpu.PrefetchScalarGridSpec(
        num_scalar_prefetch=3,           # schedule arrays -> SMEM
        grid=(D,),
        in_specs=[
            pl.BlockSpec((1, 2 * Hp), const),                     # h0c0
            pl.BlockSpec((M8, 4 * Hp), lambda d, *pf: (d, 0)),    # streamed pre-gates
            pl.BlockSpec((Hp, 4 * Hp), const),                    # W_hh (resident)
        ],
        out_specs=pl.BlockSpec((rows_total, 2 * Hp), const),      # fused [h|c] state
        scratch_shapes=[pltpu.VMEM((M8, 2 * Hp), jnp.float32)],
    )

    # Explicit VMEM budget: resident (state + W_hh + scratch) + double-buffered
    # streamed blocks + headroom.
    f32b = 4
    resident = (rows_total * 2 * Hp + Hp * 4 * Hp + M8 * 2 * Hp) * f32b
    streamed = (2 * M8 * 4 * Hp + 2 * 2 * Hp) * f32b
    vmem_bytes = int(min(100 * 2 ** 20, resident + streamed + (4 << 20)))

    kernel = functools.partial(
        _lattice_lstm_kernel, m8=M8, max_in=max_in, hp=Hp,
        zero_row=sched["zero_row"], init_row=sched["init_row"])

    state = pl.pallas_call(
        kernel,
        out_shape=jax.ShapeDtypeStruct((rows_total, 2 * Hp), jnp.float32),
        grid_spec=grid_spec,
        compiler_params=pltpu.CompilerParams(
            dimension_semantics=("arbitrary",),      # sequential recurrence
            vmem_limit_bytes=vmem_bytes),
    )(sched["wf_in"], sched["wf_cnt"], sched["wf_ign"],
      h0c0_p, pre_sched, whh)

    rows = state[sched["pos"]]                        # back to edge order
    return rows[:, :H], rows[:, Hp:Hp + H]


# ------------------------------ Lattice glue ------------------------------- #

class Lattice:
    """Minimal synthetic lattice: DAG with per-edge feature vectors."""

    def __init__(self, edges, node_num, arcs):
        # arcs[e] = (src_node, dst_node) for edge index e
        self.edges = edges
        self.edge_num = edges.shape[0]
        self.node_num = node_num
        self.arcs = list(arcs)
        self.ignore = set()
        self._build(list(range(node_num)))      # nodes in topological order

    def _build(self, node_order):
        self.nodes = node_order
        self.parent_dict = {}                   # node -> {k: out_edge}
        self.child_dict = {}                    # node -> {k: in_edge}
        for e, (src, dst) in enumerate(self.arcs):
            p = self.parent_dict.setdefault(src, {})
            p[len(p)] = e
            c = self.child_dict.setdefault(dst, {})
            c[len(c)] = e

    def reverse(self):
        self.arcs = [(dst, src) for (src, dst) in self.arcs]
        self._build(list(reversed(self.nodes)))


def _flatten_edge_list(values):
    values = list(values)
    if all(isinstance(item, list) for item in values):
        return [item for sublist in values for item in sublist]
    assert all(isinstance(item, int) for item in values)
    return values


def build_schedule(lattice, m_align=8):
    """Wavefront (topological depth) schedule for the fused kernel.

    State rows live in schedule order (row = depth * M8 + slot); two extra rows
    hold the always-zero gather-padding row and the initial [h0|c0] row.
    """
    E = lattice.edge_num
    edge_depth = [None] * E
    edge_src_in = [None] * E
    for node in lattice.nodes:
        in_edges = None
        if node in lattice.child_dict:
            in_edges = _flatten_edge_list(lattice.child_dict[node].values())
        if node in lattice.parent_dict:
            out_edges = _flatten_edge_list(lattice.parent_dict[node].values())
            depth = 0 if in_edges is None else 1 + max(edge_depth[i] for i in in_edges)
            for e in out_edges:
                edge_depth[e] = depth
                edge_src_in[e] = in_edges

    scheduled = [e for e in range(E) if edge_depth[e] is not None]
    D = (max(edge_depth[e] for e in scheduled) + 1) if scheduled else 1
    waves = [[] for _ in range(D)]
    for e in scheduled:
        waves[edge_depth[e]].append(e)
    Mmax = max([len(w) for w in waves] + [1])
    M8 = _round_up(Mmax, m_align)
    max_in = max([len(edge_src_in[e]) for e in scheduled if edge_src_in[e]] + [1])

    zero_row = D * M8                 # always-zero row (gather padding target)
    init_row = zero_row + 1           # [h0 | c0] row (in-degree-0 sources)
    rows_total = zero_row + m_align   # tail padded to a multiple of 8 rows

    pos = [zero_row] * E              # unscheduled edges read the zero row
    for d, w in enumerate(waves):
        for m, e in enumerate(w):
            pos[e] = d * M8 + m

    wf_edge, wf_cnt, wf_ign, wf_in = [], [], [], []
    for d in range(D):
        w = waves[d]
        for m in range(M8):
            if m < len(w):
                e = w[m]
                wf_edge.append(e)
                wf_ign.append(1 if e in lattice.ignore else 0)
                ins = edge_src_in[e]
                if ins:
                    wf_cnt.append(len(ins))
                    idxs = [pos[i] for i in ins]
                else:
                    wf_cnt.append(1)
                    idxs = [init_row]
            else:                     # padded wavefront slot (dummy compute)
                wf_edge.append(0)
                wf_cnt.append(1)
                wf_ign.append(0)
                idxs = [zero_row]
            wf_in.extend(idxs + [zero_row] * (max_in - len(idxs)))

    return {
        "wf_edge": jnp.asarray(wf_edge, jnp.int32),
        "wf_cnt": jnp.asarray(wf_cnt, jnp.int32),
        "wf_ign": jnp.asarray(wf_ign, jnp.int32),
        "wf_in": jnp.asarray(wf_in, jnp.int32),
        "pos": jnp.asarray(pos, jnp.int32),
        "num_depths": D,
        "m8": M8,
        "max_in": max_in,
        "rows_total": rows_total,
        "zero_row": zero_row,
        "init_row": init_row,
    }


def _host_combine_mean(rows, count):
    if count == 1:
        return rows
    return jnp.mean(rows, 0, keepdims=True)


def fused_forward_rnn(cell, lattice, input_, method, state):
    """One layer/direction traversal, fully fused into one pallas_call."""
    if method != "mean":
        # TODO(synk): 'max' / 'posterior' / 'attention' combine methods not implemented.
        raise NotImplementedError(method)
    sched = build_schedule(lattice)
    h0 = state[0].reshape(1, -1).astype(jnp.float32)
    c0 = state[1].reshape(1, -1).astype(jnp.float32)
    h0c0 = jnp.concatenate([h0, c0], axis=0)                 # (2, H)
    edge_hidden, edge_cell = lattice_lstm_pallas(cell, input_, h0c0, sched)

    # End-node state = combine of its in-edge states (same as original glue).
    end_node = lattice.nodes[-1]
    if end_node in lattice.child_dict:
        in_edges = _flatten_edge_list(lattice.child_dict[end_node].values())
        idx = jnp.asarray(in_edges, jnp.int32)
        h_end = _host_combine_mean(edge_hidden[idx], len(in_edges))
        c_end = _host_combine_mean(edge_cell[idx], len(in_edges))
    else:
        h_end, c_end = h0, c0
    return edge_hidden, (h_end, c_end)


def lstm_lattice_forward_fused(params, lattice, method, hidden_size, num_layers,
                               bidirectional):
    num_directions = 2 if bidirectional else 1
    h_0 = jnp.zeros((num_directions, hidden_size), jnp.float32)
    state = (h_0, h_0)
    output = lattice.edges
    if bidirectional:
        lattice.reverse()
    for layer in range(num_layers):
        cur_output, cur_h_n, cur_c_n = [], [], []
        for direction in range(num_directions):
            cell = params[(layer, direction)]
            cur_state = (state[0][direction], state[1][direction])
            if bidirectional:
                lattice.reverse()
            layer_output, (h_n, c_n) = fused_forward_rnn(
                cell, lattice, output, method, cur_state)
            cur_output.append(layer_output)
            cur_h_n.append(h_n)
            cur_c_n.append(c_n)
        output = jnp.concatenate(cur_output, 1)
        state = (jnp.concatenate(cur_h_n, 0), jnp.concatenate(cur_c_n, 0))
    return output


# ------------------------ pure-jnp reference path -------------------------- #

def ref_cell_step(cell, x, h, c):
    H = cell["whh"].shape[0]
    gates = x @ cell["wih"] + h @ cell["whh"] + cell["b"]
    i = jax.nn.sigmoid(gates[:, :H])
    f = jax.nn.sigmoid(gates[:, H:2 * H])
    g = jnp.tanh(gates[:, 2 * H:3 * H])
    o = jax.nn.sigmoid(gates[:, 3 * H:])
    c_new = f * c + i * g
    return o * jnp.tanh(c_new), c_new


def combine_edges_ref(method, lattice, hidden, in_edges):
    in_hidden = jnp.concatenate([hidden[i].reshape(1, -1) for i in in_edges], 0)
    if len(in_edges) == 1:
        return in_hidden
    if method == "mean":
        return jnp.mean(in_hidden, 0, keepdims=True)
    raise NotImplementedError(method)


def forward_rnn_ref(cell, lattice, input_, method, state):
    edge_hidden = [None] * lattice.edge_num
    node_hidden = [None] * lattice.node_num
    edge_cell = [None] * lattice.edge_num
    node_cell = [None] * lattice.node_num
    node_hidden[lattice.nodes[0]] = state[0].reshape(1, -1)
    node_cell[lattice.nodes[0]] = state[1].reshape(1, -1)
    for each_node in lattice.nodes:
        if each_node in lattice.child_dict:
            in_edges = _flatten_edge_list(lattice.child_dict[each_node].values())
            node_hidden[each_node] = combine_edges_ref(method, lattice, edge_hidden, in_edges)
            node_cell[each_node] = combine_edges_ref(method, lattice, edge_cell, in_edges)
        if each_node in lattice.parent_dict:
            out_edges = _flatten_edge_list(lattice.parent_dict[each_node].values())
            for each_edge in out_edges:
                old_state = (node_hidden[each_node], node_cell[each_node])
                if each_edge in lattice.ignore:
                    new_state = old_state
                else:
                    new_state = ref_cell_step(cell, input_[each_edge].reshape(1, -1),
                                              old_state[0], old_state[1])
                edge_hidden[each_edge], edge_cell[each_edge] = new_state
    end_node_state = (node_hidden[lattice.nodes[-1]], node_cell[lattice.nodes[-1]])
    return jnp.concatenate(edge_hidden, 0), end_node_state


def lstm_lattice_forward_ref(params, lattice, method, hidden_size, num_layers,
                             bidirectional):
    num_directions = 2 if bidirectional else 1
    h_0 = jnp.zeros((num_directions, hidden_size), jnp.float32)
    state = (h_0, h_0)
    output = lattice.edges
    if bidirectional:
        lattice.reverse()
    for layer in range(num_layers):
        cur_output, cur_h_n, cur_c_n = [], [], []
        for direction in range(num_directions):
            cell = params[(layer, direction)]
            cur_state = (state[0][direction], state[1][direction])
            if bidirectional:
                lattice.reverse()
            layer_output, (h_n, c_n) = forward_rnn_ref(
                cell, lattice, output, method, cur_state)
            cur_output.append(layer_output)
            cur_h_n.append(h_n)
            cur_c_n.append(c_n)
        output = jnp.concatenate(cur_output, 1)
        state = (jnp.concatenate(cur_h_n, 0), jnp.concatenate(cur_c_n, 0))
    return output


# ------------------------------ parameters --------------------------------- #

def init_cell(key, input_size, hidden_size):
    """torch.nn.LSTMCell-style deterministic init (uniform +-1/sqrt(H))."""
    stdv = 1.0 / math.sqrt(hidden_size)
    k1, k2, k3, k4 = jax.random.split(key, 4)
    w_ih = jax.random.uniform(k1, (4 * hidden_size, input_size), jnp.float32, -stdv, stdv)
    w_hh = jax.random.uniform(k2, (4 * hidden_size, hidden_size), jnp.float32, -stdv, stdv)
    b_ih = jax.random.uniform(k3, (4 * hidden_size,), jnp.float32, -stdv, stdv)
    b_hh = jax.random.uniform(k4, (4 * hidden_size,), jnp.float32, -stdv, stdv)
    return {"wih": w_ih.T, "whh": w_hh.T, "b": (b_ih + b_hh).reshape(1, -1)}


# --------------------------------- main ------------------------------------ #

if __name__ == "__main__":
    input_size = 16
    hidden_size = 32
    num_layers = 2
    bidirectional = True
    num_directions = 2 if bidirectional else 1
    method = "mean"

    # Small synthetic DAG lattice: 5 nodes, 6 edges (nodes already topo-ordered).
    arcs = [(0, 1), (0, 2), (1, 3), (2, 3), (3, 4), (1, 4)]
    node_num = 5
    edge_num = len(arcs)

    key = jax.random.PRNGKey(0)
    k_edges, k_params = jax.random.split(key)
    edge_feats = jax.random.normal(k_edges, (edge_num, input_size), jnp.float32)

    params = {}
    keys = jax.random.split(k_params, num_layers * num_directions)
    idx = 0
    for layer in range(num_layers):
        layer_in = input_size if layer == 0 else hidden_size * num_directions
        for direction in range(num_directions):
            params[(layer, direction)] = init_cell(keys[idx], layer_in, hidden_size)
            idx += 1

    # Fused, wavefront-batched Pallas forward (one pallas_call per traversal).
    lattice = Lattice(edge_feats, node_num, arcs)
    lattice.ignore.add(3)                     # exercise the pass-through path
    out = lstm_lattice_forward_fused(params, lattice, method, hidden_size,
                                     num_layers, bidirectional)
    out = jax.block_until_ready(out)
    assert out.shape == (edge_num, hidden_size * num_directions), out.shape

    # Pure-jnp reference check (fresh lattice, since reverse() mutates state).
    lattice_ref = Lattice(edge_feats, node_num, arcs)
    lattice_ref.ignore.add(3)
    out_ref = lstm_lattice_forward_ref(params, lattice_ref, method, hidden_size,
                                       num_layers, bidirectional)
    out_ref = jax.block_until_ready(out_ref)
    max_err = float(jnp.max(jnp.abs(out - out_ref)))
    assert jnp.allclose(out, out_ref, atol=1e-4, rtol=1e-4), max_err

    print("KERNEL_OK")
</pallas_src>

<mosaic_0001>
module attributes {stable_mosaic.version = 11 : i64} {
  func.func @_lattice_lstm_kernel(%arg0: i32, %arg1: memref<48xi32, #tpu.memory_space<smem>>, %arg2: memref<24xi32, #tpu.memory_space<smem>>, %arg3: memref<24xi32, #tpu.memory_space<smem>>, %arg4: memref<1x256xf32, #tpu.memory_space<vmem>>, %arg5: memref<8x512xf32, #tpu.memory_space<vmem>>, %arg6: memref<128x512xf32, #tpu.memory_space<vmem>>, %arg7: memref<32x256xf32, #tpu.memory_space<vmem>>, %arg8: memref<8x256xf32, #tpu.memory_space<vmem>>) attributes {dimension_semantics = [#tpu.dimension_semantics<arbitrary>], iteration_bounds = array<i64: 3>, scalar_prefetch = 3 : i64, scratch_operands = 1 : i64, tpu.core_type = #tpu.core_type<tc>, window_params = [{pipeline_mode = #tpu.pipeline_mode<synchronous>, transform_indices = @transform_0, window_bounds = array<i64: 1, 256>}, {transform_indices = @transform_1, window_bounds = array<i64: 8, 512>}, {pipeline_mode = #tpu.pipeline_mode<synchronous>, transform_indices = @transform_2, window_bounds = array<i64: 128, 512>}, {pipeline_mode = #tpu.pipeline_mode<synchronous>, transform_indices = @transform_3, window_bounds = array<i64: 32, 256>}]} {
    %c0_i32 = arith.constant 0 : i32
    %0 = arith.cmpi eq, %arg0, %c0_i32 : i32
    %1 = arith.extui %0 : i1 to i32
    %c0_i32_0 = arith.constant 0 : i32
    %2 = arith.cmpi ne, %1, %c0_i32_0 : i32
    scf.if %2 {
      %cst_118 = arith.constant 0.000000e+00 : f32
      %303 = vector.broadcast %cst_118 : f32 to vector<8x256xf32>
      %c24 = arith.constant 24 : index
      %c0_119 = arith.constant 0 : index
      %304 = vector.load %arg7[%c24, %c0_119] : memref<32x256xf32, #tpu.memory_space<vmem>>, vector<8x256xf32>
      tpu.vector_store %arg7[%c24, %c0_119], %303 {strides = array<i32>} : memref<32x256xf32, #tpu.memory_space<vmem>>, vector<8x256xf32>,
      %c0_120 = arith.constant 0 : index
      %c0_121 = arith.constant 0 : index
      %305 = vector.load %arg4[%c0_120, %c0_121] : memref<1x256xf32, #tpu.memory_space<vmem>>, vector<1x256xf32>
      %c25 = arith.constant 25 : index
      %c0_122 = arith.constant 0 : index
      %306 = vector.load %arg7[%c25, %c0_122] : memref<32x256xf32, #tpu.memory_space<vmem>>, vector<1x256xf32>
      tpu.vector_store %arg7[%c25, %c0_122], %305 {strides = array<i32>} : memref<32x256xf32, #tpu.memory_space<vmem>>, vector<1x256xf32>,
    } else {
    }
    %c8_i32 = arith.constant 8 : i32
    %3 = arith.muli %arg0, %c8_i32 : i32
    %c0_i32_1 = arith.constant 0 : i32
    %4 = arith.addi %3, %c0_i32_1 : i32
    %cst = arith.constant 0.000000e+00 : f32
    %5 = vector.broadcast %cst : f32 to vector<1x256xf32>
    %c2_i32 = arith.constant 2 : i32
    %6 = arith.muli %4, %c2_i32 : i32
    %c0_i32_2 = arith.constant 0 : i32
    %7 = arith.addi %6, %c0_i32_2 : i32
    %8 = arith.index_cast %7 : i32 to index
    %9 = memref.load %arg1[%8] : memref<48xi32, #tpu.memory_space<smem>>
    %10 = arith.index_cast %9 : i32 to index
    %c0 = arith.constant 0 : index
    %11 = vector.load %arg7[%10, %c0] : memref<32x256xf32, #tpu.memory_space<vmem>>, vector<1x256xf32>
    %12 = arith.addf %5, %11 : vector<1x256xf32>
    %c2_i32_3 = arith.constant 2 : i32
    %13 = arith.muli %4, %c2_i32_3 : i32
    %c1_i32 = arith.constant 1 : i32
    %14 = arith.addi %13, %c1_i32 : i32
    %15 = arith.index_cast %14 : i32 to index
    %16 = memref.load %arg1[%15] : memref<48xi32, #tpu.memory_space<smem>>
    %17 = arith.index_cast %16 : i32 to index
    %c0_4 = arith.constant 0 : index
    %18 = vector.load %arg7[%17, %c0_4] : memref<32x256xf32, #tpu.memory_space<vmem>>, vector<1x256xf32>
    %19 = arith.addf %12, %18 : vector<1x256xf32>
    %20 = arith.index_cast %4 : i32 to index
    %21 = memref.load %arg2[%20] : memref<24xi32, #tpu.memory_space<smem>>
    %22 = arith.sitofp %21 : i32 to f32
    %cst_5 = arith.constant 1.000000e+00 : f32
    %23 = arith.divf %cst_5, %22 : f32
    %24 = vector.broadcast %23 : f32 to vector<1x256xf32>
    %25 = arith.mulf %19, %24 : vector<1x256xf32>
    %c0_6 = arith.constant 0 : index
    %c0_7 = arith.constant 0 : index
    %26 = vector.load %arg8[%c0_6, %c0_7] : memref<8x256xf32, #tpu.memory_space<vmem>>, vector<1x256xf32>
    tpu.vector_store %arg8[%c0_6, %c0_7], %25 {strides = array<i32>} : memref<8x256xf32, #tpu.memory_space<vmem>>, vector<1x256xf32>,
    %c8_i32_8 = arith.constant 8 : i32
    %27 = arith.muli %arg0, %c8_i32_8 : i32
    %c1_i32_9 = arith.constant 1 : i32
    %28 = arith.addi %27, %c1_i32_9 : i32
    %cst_10 = arith.constant 0.000000e+00 : f32
    %29 = vector.broadcast %cst_10 : f32 to vector<1x256xf32>
    %c2_i32_11 = arith.constant 2 : i32
    %30 = arith.muli %28, %c2_i32_11 : i32
    %c0_i32_12 = arith.constant 0 : i32
    %31 = arith.addi %30, %c0_i32_12 : i32
    %32 = arith.index_cast %31 : i32 to index
    %33 = memref.load %arg1[%32] : memref<48xi32, #tpu.memory_space<smem>>
    %34 = arith.index_cast %33 : i32 to index
    %c0_13 = arith.constant 0 : index
    %35 = vector.load %arg7[%34, %c0_13] : memref<32x256xf32, #tpu.memory_space<vmem>>, vector<1x256xf32>
    %36 = arith.addf %29, %35 : vector<1x256xf32>
    %c2_i32_14 = arith.constant 2 : i32
    %37 = arith.muli %28, %c2_i32_14 : i32
    %c1_i32_15 = arith.constant 1 : i32
    %38 = arith.addi %37, %c1_i32_15 : i32
    %39 = arith.index_cast %38 : i32 to index
    %40 = memref.load %arg1[%39] : memref<48xi32, #tpu.memory_space<smem>>
    %41 = arith.index_cast %40 : i32 to index
    %c0_16 = arith.constant 0 : index
    %42 = vector.load %arg7[%41, %c0_16] : memref<32x256xf32, #tpu.memory_space<vmem>>, vector<1x256xf32>
    %43 = arith.addf %36, %42 : vector<1x256xf32>
    %44 = arith.index_cast %28 : i32 to index
    %45 = memref.load %arg2[%44] : memref<24xi32, #tpu.memory_space<smem>>
    %46 = arith.sitofp %45 : i32 to f32
    %cst_17 = arith.constant 1.000000e+00 : f32
    %47 = arith.divf %cst_17, %46 : f32
    %48 = vector.broadcast %47 : f32 to vector<1x256xf32>
    %49 = arith.mulf %43, %48 : vector<1x256xf32>
    %c1 = arith.constant 1 : index
    %c0_18 = arith.constant 0 : index
    %50 = vector.load %arg8[%c1, %c0_18] : memref<8x256xf32, #tpu.memory_space<vmem>>, vector<1x256xf32>
    tpu.vector_store %arg8[%c1, %c0_18], %49 {strides = array<i32>} : memref<8x256xf32, #tpu.memory_space<vmem>>, vector<1x256xf32>,
    %c8_i32_19 = arith.constant 8 : i32
    %51 = arith.muli %arg0, %c8_i32_19 : i32
    %c2_i32_20 = arith.constant 2 : i32
    %52 = arith.addi %51, %c2_i32_20 : i32
    %cst_21 = arith.constant 0.000000e+00 : f32
    %53 = vector.broadcast %cst_21 : f32 to vector<1x256xf32>
    %c2_i32_22 = arith.constant 2 : i32
    %54 = arith.muli %52, %c2_i32_22 : i32
    %c0_i32_23 = arith.constant 0 : i32
    %55 = arith.addi %54, %c0_i32_23 : i32
    %56 = arith.index_cast %55 : i32 to index
    %57 = memref.load %arg1[%56] : memref<48xi32, #tpu.memory_space<smem>>
    %58 = arith.index_cast %57 : i32 to index
    %c0_24 = arith.constant 0 : index
    %59 = vector.load %arg7[%58, %c0_24] : memref<32x256xf32, #tpu.memory_space<vmem>>, vector<1x256xf32>
    %60 = arith.addf %53, %59 : vector<1x256xf32>
    %c2_i32_25 = arith.constant 2 : i32
    %61 = arith.muli %52, %c2_i32_25 : i32
    %c1_i32_26 = arith.constant 1 : i32
    %62 = arith.addi %61, %c1_i32_26 : i32
    %63 = arith.index_cast %62 : i32 to index
    %64 = memref.load %arg1[%63] : memref<48xi32, #tpu.memory_space<smem>>
    %65 = arith.index_cast %64 : i32 to index
    %c0_27 = arith.constant 0 : index
    %66 = vector.load %arg7[%65, %c0_27] : memref<32x256xf32, #tpu.memory_space<vmem>>, vector<1x256xf32>
    %67 = arith.addf %60, %66 : vector<1x256xf32>
    %68 = arith.index_cast %52 : i32 to index
    %69 = memref.load %arg2[%68] : memref<24xi32, #tpu.memory_space<smem>>
    %70 = arith.sitofp %69 : i32 to f32
    %cst_28 = arith.constant 1.000000e+00 : f32
    %71 = arith.divf %cst_28, %70 : f32
    %72 = vector.broadcast %71 : f32 to vector<1x256xf32>
    %73 = arith.mulf %67, %72 : vector<1x256xf32>
    %c2 = arith.constant 2 : index
    %c0_29 = arith.constant 0 : index
    %74 = vector.load %arg8[%c2, %c0_29] : memref<8x256xf32, #tpu.memory_space<vmem>>, vector<1x256xf32>
    tpu.vector_store %arg8[%c2, %c0_29], %73 {strides = array<i32>} : memref<8x256xf32, #tpu.memory_space<vmem>>, vector<1x256xf32>,
    %c8_i32_30 = arith.constant 8 : i32
    %75 = arith.muli %arg0, %c8_i32_30 : i32
    %c3_i32 = arith.constant 3 : i32
    %76 = arith.addi %75, %c3_i32 : i32
    %cst_31 = arith.constant 0.000000e+00 : f32
    %77 = vector.broadcast %cst_31 : f32 to vector<1x256xf32>
    %c2_i32_32 = arith.constant 2 : i32
    %78 = arith.muli %76, %c2_i32_32 : i32
    %c0_i32_33 = arith.constant 0 : i32
    %79 = arith.addi %78, %c0_i32_33 : i32
    %80 = arith.index_cast %79 : i32 to index
    %81 = memref.load %arg1[%80] : memref<48xi32, #tpu.memory_space<smem>>
    %82 = arith.index_cast %81 : i32 to index
    %c0_34 = arith.constant 0 : index
    %83 = vector.load %arg7[%82, %c0_34] : memref<32x256xf32, #tpu.memory_space<vmem>>, vector<1x256xf32>
    %84 = arith.addf %77, %83 : vector<1x256xf32>
    %c2_i32_35 = arith.constant 2 : i32
    %85 = arith.muli %76, %c2_i32_35 : i32
    %c1_i32_36 = arith.constant 1 : i32
    %86 = arith.addi %85, %c1_i32_36 : i32
    %87 = arith.index_cast %86 : i32 to index
    %88 = memref.load %arg1[%87] : memref<48xi32, #tpu.memory_space<smem>>
    %89 = arith.index_cast %88 : i32 to index
    %c0_37 = arith.constant 0 : index
    %90 = vector.load %arg7[%89, %c0_37] : memref<32x256xf32, #tpu.memory_space<vmem>>, vector<1x256xf32>
    %91 = arith.addf %84, %90 : vector<1x256xf32>
    %92 = arith.index_cast %76 : i32 to index
    %93 = memref.load %arg2[%92] : memref<24xi32, #tpu.memory_space<smem>>
    %94 = arith.sitofp %93 : i32 to f32
    %cst_38 = arith.constant 1.000000e+00 : f32
    %95 = arith.divf %cst_38, %94 : f32
    %96 = vector.broadcast %95 : f32 to vector<1x256xf32>
    %97 = arith.mulf %91, %96 : vector<1x256xf32>
    %c3 = arith.constant 3 : index
    %c0_39 = arith.constant 0 : index
    %98 = vector.load %arg8[%c3, %c0_39] : memref<8x256xf32, #tpu.memory_space<vmem>>, vector<1x256xf32>
    tpu.vector_store %arg8[%c3, %c0_39], %97 {strides = array<i32>} : memref<8x256xf32, #tpu.memory_space<vmem>>, vector<1x256xf32>,
    %c8_i32_40 = arith.constant 8 : i32
    %99 = arith.muli %arg0, %c8_i32_40 : i32
    %c4_i32 = arith.constant 4 : i32
    %100 = arith.addi %99, %c4_i32 : i32
    %cst_41 = arith.constant 0.000000e+00 : f32
    %101 = vector.broadcast %cst_41 : f32 to vector<1x256xf32>
    %c2_i32_42 = arith.constant 2 : i32
    %102 = arith.muli %100, %c2_i32_42 : i32
    %c0_i32_43 = arith.constant 0 : i32
    %103 = arith.addi %102, %c0_i32_43 : i32
    %104 = arith.index_cast %103 : i32 to index
    %105 = memref.load %arg1[%104] : memref<48xi32, #tpu.memory_space<smem>>
    %106 = arith.index_cast %105 : i32 to index
    %c0_44 = arith.constant 0 : index
    %107 = vector.load %arg7[%106, %c0_44] : memref<32x256xf32, #tpu.memory_space<vmem>>, vector<1x256xf32>
    %108 = arith.addf %101, %107 : vector<1x256xf32>
    %c2_i32_45 = arith.constant 2 : i32
    %109 = arith.muli %100, %c2_i32_45 : i32
    %c1_i32_46 = arith.constant 1 : i32
    %110 = arith.addi %109, %c1_i32_46 : i32
    %111 = arith.index_cast %110 : i32 to index
    %112 = memref.load %arg1[%111] : memref<48xi32, #tpu.memory_space<smem>>
    %113 = arith.index_cast %112 : i32 to index
    %c0_47 = arith.constant 0 : index
    %114 = vector.load %arg7[%113, %c0_47] : memref<32x256xf32, #tpu.memory_space<vmem>>, vector<1x256xf32>
    %115 = arith.addf %108, %114 : vector<1x256xf32>
    %116 = arith.index_cast %100 : i32 to index
    %117 = memref.load %arg2[%116] : memref<24xi32, #tpu.memory_space<smem>>
    %118 = arith.sitofp %117 : i32 to f32
    %cst_48 = arith.constant 1.000000e+00 : f32
    %119 = arith.divf %cst_48, %118 : f32
    %120 = vector.broadcast %119 : f32 to vector<1x256xf32>
    %121 = arith.mulf %115, %120 : vector<1x256xf32>
    %c4 = arith.constant 4 : index
    %c0_49 = arith.constant 0 : index
    %122 = vector.load %arg8[%c4, %c0_49] : memref<8x256xf32, #tpu.memory_space<vmem>>, vector<1x256xf32>
    tpu.vector_store %arg8[%c4, %c0_49], %121 {strides = array<i32>} : memref<8x256xf32, #tpu.memory_space<vmem>>, vector<1x256xf32>,
    %c8_i32_50 = arith.constant 8 : i32
    %123 = arith.muli %arg0, %c8_i32_50 : i32
    %c5_i32 = arith.constant 5 : i32
    %124 = arith.addi %123, %c5_i32 : i32
    %cst_51 = arith.constant 0.000000e+00 : f32
    %125 = vector.broadcast %cst_51 : f32 to vector<1x256xf32>
    %c2_i32_52 = arith.constant 2 : i32
    %126 = arith.muli %124, %c2_i32_52 : i32
    %c0_i32_53 = arith.constant 0 : i32
    %127 = arith.addi %126, %c0_i32_53 : i32
    %128 = arith.index_cast %127 : i32 to index
    %129 = memref.load %arg1[%128] : memref<48xi32, #tpu.memory_space<smem>>
    %130 = arith.index_cast %129 : i32 to index
    %c0_54 = arith.constant 0 : index
    %131 = vector.load %arg7[%130, %c0_54] : memref<32x256xf32, #tpu.memory_space<vmem>>, vector<1x256xf32>
    %132 = arith.addf %125, %131 : vector<1x256xf32>
    %c2_i32_55 = arith.constant 2 : i32
    %133 = arith.muli %124, %c2_i32_55 : i32
    %c1_i32_56 = arith.constant 1 : i32
    %134 = arith.addi %133, %c1_i32_56 : i32
    %135 = arith.index_cast %134 : i32 to index
    %136 = memref.load %arg1[%135] : memref<48xi32, #tpu.memory_space<smem>>
    %137 = arith.index_cast %136 : i32 to index
    %c0_57 = arith.constant 0 : index
    %138 = vector.load %arg7[%137, %c0_57] : memref<32x256xf32, #tpu.memory_space<vmem>>, vector<1x256xf32>
    %139 = arith.addf %132, %138 : vector<1x256xf32>
    %140 = arith.index_cast %124 : i32 to index
    %141 = memref.load %arg2[%140] : memref<24xi32, #tpu.memory_space<smem>>
    %142 = arith.sitofp %141 : i32 to f32
    %cst_58 = arith.constant 1.000000e+00 : f32
    %143 = arith.divf %cst_58, %142 : f32
    %144 = vector.broadcast %143 : f32 to vector<1x256xf32>
    %145 = arith.mulf %139, %144 : vector<1x256xf32>
    %c5 = arith.constant 5 : index
    %c0_59 = arith.constant 0 : index
    %146 = vector.load %arg8[%c5, %c0_59] : memref<8x256xf32, #tpu.memory_space<vmem>>, vector<1x256xf32>
    tpu.vector_store %arg8[%c5, %c0_59], %145 {strides = array<i32>} : memref<8x256xf32, #tpu.memory_space<vmem>>, vector<1x256xf32>,
    %c8_i32_60 = arith.constant 8 : i32
    %147 = arith.muli %arg0, %c8_i32_60 : i32
    %c6_i32 = arith.constant 6 : i32
    %148 = arith.addi %147, %c6_i32 : i32
    %cst_61 = arith.constant 0.000000e+00 : f32
    %149 = vector.broadcast %cst_61 : f32 to vector<1x256xf32>
    %c2_i32_62 = arith.constant 2 : i32
    %150 = arith.muli %148, %c2_i32_62 : i32
    %c0_i32_63 = arith.constant 0 : i32
    %151 = arith.addi %150, %c0_i32_63 : i32
    %152 = arith.index_cast %151 : i32 to index
    %153 = memref.load %arg1[%152] : memref<48xi32, #tpu.memory_space<smem>>
    %154 = arith.index_cast %153 : i32 to index
    %c0_64 = arith.constant 0 : index
    %155 = vector.load %arg7[%154, %c0_64] : memref<32x256xf32, #tpu.memory_space<vmem>>, vector<1x256xf32>
    %156 = arith.addf %149, %155 : vector<1x256xf32>
    %c2_i32_65 = arith.constant 2 : i32
    %157 = arith.muli %148, %c2_i32_65 : i32
    %c1_i32_66 = arith.constant 1 : i32
    %158 = arith.addi %157, %c1_i32_66 : i32
    %159 = arith.index_cast %158 : i32 to index
    %160 = memref.load %arg1[%159] : memref<48xi32, #tpu.memory_space<smem>>
    %161 = arith.index_cast %160 : i32 to index
    %c0_67 = arith.constant 0 : index
    %162 = vector.load %arg7[%161, %c0_67] : memref<32x256xf32, #tpu.memory_space<vmem>>, vector<1x256xf32>
    %163 = arith.addf %156, %162 : vector<1x256xf32>
    %164 = arith.index_cast %148 : i32 to index
    %165 = memref.load %arg2[%164] : memref<24xi32, #tpu.memory_space<smem>>
    %166 = arith.sitofp %165 : i32 to f32
    %cst_68 = arith.constant 1.000000e+00 : f32
    %167 = arith.divf %cst_68, %166 : f32
    %168 = vector.broadcast %167 : f32 to vector<1x256xf32>
    %169 = arith.mulf %163, %168 : vector<1x256xf32>
    %c6 = arith.constant 6 : index
    %c0_69 = arith.constant 0 : index
    %170 = vector.load %arg8[%c6, %c0_69] : memref<8x256xf32, #tpu.memory_space<vmem>>, vector<1x256xf32>
    tpu.vector_store %arg8[%c6, %c0_69], %169 {strides = array<i32>} : memref<8x256xf32, #tpu.memory_space<vmem>>, vector<1x256xf32>,
    %c8_i32_70 = arith.constant 8 : i32
    %171 = arith.muli %arg0, %c8_i32_70 : i32
    %c7_i32 = arith.constant 7 : i32
    %172 = arith.addi %171, %c7_i32 : i32
    %cst_71 = arith.constant 0.000000e+00 : f32
    %173 = vector.broadcast %cst_71 : f32 to vector<1x256xf32>
    %c2_i32_72 = arith.constant 2 : i32
    %174 = arith.muli %172, %c2_i32_72 : i32
    %c0_i32_73 = arith.constant 0 : i32
    %175 = arith.addi %174, %c0_i32_73 : i32
    %176 = arith.index_cast %175 : i32 to index
    %177 = memref.load %arg1[%176] : memref<48xi32, #tpu.memory_space<smem>>
    %178 = arith.index_cast %177 : i32 to index
    %c0_74 = arith.constant 0 : index
    %179 = vector.load %arg7[%178, %c0_74] : memref<32x256xf32, #tpu.memory_space<vmem>>, vector<1x256xf32>
    %180 = arith.addf %173, %179 : vector<1x256xf32>
    %c2_i32_75 = arith.constant 2 : i32
    %181 = arith.muli %172, %c2_i32_75 : i32
    %c1_i32_76 = arith.constant 1 : i32
    %182 = arith.addi %181, %c1_i32_76 : i32
    %183 = arith.index_cast %182 : i32 to index
    %184 = memref.load %arg1[%183] : memref<48xi32, #tpu.memory_space<smem>>
    %185 = arith.index_cast %184 : i32 to index
    %c0_77 = arith.constant 0 : index
    %186 = vector.load %arg7[%185, %c0_77] : memref<32x256xf32, #tpu.memory_space<vmem>>, vector<1x256xf32>
    %187 = arith.addf %180, %186 : vector<1x256xf32>
    %188 = arith.index_cast %172 : i32 to index
    %189 = memref.load %arg2[%188] : memref<24xi32, #tpu.memory_space<smem>>
    %190 = arith.sitofp %189 : i32 to f32
    %cst_78 = arith.constant 1.000000e+00 : f32
    %191 = arith.divf %cst_78, %190 : f32
    %192 = vector.broadcast %191 : f32 to vector<1x256xf32>
    %193 = arith.mulf %187, %192 : vector<1x256xf32>
    %c7 = arith.constant 7 : index
    %c0_79 = arith.constant 0 : index
    %194 = vector.load %arg8[%c7, %c0_79] : memref<8x256xf32, #tpu.memory_space<vmem>>, vector<1x256xf32>
    tpu.vector_store %arg8[%c7, %c0_79], %193 {strides = array<i32>} : memref<8x256xf32, #tpu.memory_space<vmem>>, vector<1x256xf32>,
    %c0_80 = arith.constant 0 : index
    %c0_81 = arith.constant 0 : index
    %195 = vector.load %arg8[%c0_80, %c0_81] : memref<8x256xf32, #tpu.memory_space<vmem>>, vector<8x256xf32>
    %196 = vector.extract_strided_slice %195 {offsets = [0, 0], sizes = [8, 128], strides = [1, 1]} : vector<8x256xf32> to vector<8x128xf32>
    %197 = vector.extract_strided_slice %195 {offsets = [0, 128], sizes = [8, 128], strides = [1, 1]} : vector<8x256xf32> to vector<8x128xf32>
    %c0_82 = arith.constant 0 : index
    %c0_83 = arith.constant 0 : index
    %198 = vector.load %arg5[%c0_82, %c0_83] : memref<8x512xf32, #tpu.memory_space<vmem>>, vector<8x512xf32>
    %c0_84 = arith.constant 0 : index
    %c0_85 = arith.constant 0 : index
    %199 = vector.load %arg6[%c0_84, %c0_85] : memref<128x512xf32, #tpu.memory_space<vmem>>, vector<128x512xf32>
    %cst_86 = arith.constant dense<0.000000e+00> : vector<8x512xf32>
    %200 = tpu.matmul %196, %199, %cst_86 {dimension_numbers = #tpu.dot_dimension_numbers<[1], [0], [0], [1], [0, 0, 1, 1], [], []>} : vector<8x128xf32>, vector<128x512xf32>, vector<8x512xf32> -> vector<8x512xf32>
    %201 = arith.addf %198, %200 : vector<8x512xf32>
    %202 = vector.extract_strided_slice %201 {offsets = [0, 0], sizes = [8, 128], strides = [1, 1]} : vector<8x512xf32> to vector<8x128xf32>
    %203 = arith.negf %202 : vector<8x128xf32>
    %204 = math.exp %203 : vector<8x128xf32>
    %cst_87 = arith.constant 1.000000e+00 : f32
    %205 = vector.broadcast %cst_87 : f32 to vector<8x128xf32>
    %206 = arith.addf %205, %204 : vector<8x128xf32>
    %207 = arith.divf %205, %206 : vector<8x128xf32>
    %208 = vector.extract_strided_slice %201 {offsets = [0, 128], sizes = [8, 128], strides = [1, 1]} : vector<8x512xf32> to vector<8x128xf32>
    %209 = arith.negf %208 : vector<8x128xf32>
    %210 = math.exp %209 : vector<8x128xf32>
    %cst_88 = arith.constant 1.000000e+00 : f32
    %211 = vector.broadcast %cst_88 : f32 to vector<8x128xf32>
    %212 = arith.addf %211, %210 : vector<8x128xf32>
    %213 = arith.divf %211, %212 : vector<8x128xf32>
    %214 = vector.extract_strided_slice %201 {offsets = [0, 256], sizes = [8, 128], strides = [1, 1]} : vector<8x512xf32> to vector<8x128xf32>
    %215 = math.tanh %214 : vector<8x128xf32>
    %216 = vector.extract_strided_slice %201 {offsets = [0, 384], sizes = [8, 128], strides = [1, 1]} : vector<8x512xf32> to vector<8x128xf32>
    %217 = arith.negf %216 : vector<8x128xf32>
    %218 = math.exp %217 : vector<8x128xf32>
    %cst_89 = arith.constant 1.000000e+00 : f32
    %219 = vector.broadcast %cst_89 : f32 to vector<8x128xf32>
    %220 = arith.addf %219, %218 : vector<8x128xf32>
    %221 = arith.divf %219, %220 : vector<8x128xf32>
    %222 = arith.mulf %213, %197 : vector<8x128xf32>
    %223 = arith.mulf %207, %215 : vector<8x128xf32>
    %224 = arith.addf %222, %223 : vector<8x128xf32>
    %225 = math.tanh %224 : vector<8x128xf32>
    %226 = arith.mulf %221, %225 : vector<8x128xf32>
    %227 = tpu.concatenate %226, %224 in 1 : vector<8x128xf32>, vector<8x128xf32> -> vector<8x256xf32>
    %228 = tpu.iota {dimensions = array<i32: 0>} : vector<8x1xi32>
    %c0_i32_90 = arith.constant 0 : i32
    %229 = vector.broadcast %c0_i32_90 : i32 to vector<8x1xi32>
    %c0_i32_91 = arith.constant 0 : i32
    %230 = vector.broadcast %c0_i32_91 : i32 to vector<8x1xi32>
    %231 = arith.cmpi eq, %228, %230 : vector<8x1xi32>
    %c8_i32_92 = arith.constant 8 : i32
    %232 = arith.muli %arg0, %c8_i32_92 : i32
    %c0_i32_93 = arith.constant 0 : i32
    %233 = arith.addi %232, %c0_i32_93 : i32
    %234 = arith.index_cast %233 : i32 to index
    %235 = memref.load %arg3[%234] : memref<24xi32, #tpu.memory_space<smem>>
    %236 = vector.broadcast %235 : i32 to vector<8x1xi32>
    %237 = arith.select %231, %236, %229 : vector<8x1xi1>, vector<8x1xi32>
    %c1_i32_94 = arith.constant 1 : i32
    %238 = vector.broadcast %c1_i32_94 : i32 to vector<8x1xi32>
    %239 = arith.cmpi eq, %228, %238 : vector<8x1xi32>
    %c8_i32_95 = arith.constant 8 : i32
    %240 = arith.muli %arg0, %c8_i32_95 : i32
    %c1_i32_96 = arith.constant 1 : i32
    %241 = arith.addi %240, %c1_i32_96 : i32
    %242 = arith.index_cast %241 : i32 to index
    %243 = memref.load %arg3[%242] : memref<24xi32, #tpu.memory_space<smem>>
    %244 = vector.broadcast %243 : i32 to vector<8x1xi32>
    %245 = arith.select %239, %244, %237 : vector<8x1xi1>, vector<8x1xi32>
    %c2_i32_97 = arith.constant 2 : i32
    %246 = vector.broadcast %c2_i32_97 : i32 to vector<8x1xi32>
    %247 = arith.cmpi eq, %228, %246 : vector<8x1xi32>
    %c8_i32_98 = arith.constant 8 : i32
    %248 = arith.muli %arg0, %c8_i32_98 : i32
    %c2_i32_99 = arith.constant 2 : i32
    %249 = arith.addi %248, %c2_i32_99 : i32
    %250 = arith.index_cast %249 : i32 to index
    %251 = memref.load %arg3[%250] : memref<24xi32, #tpu.memory_space<smem>>
    %252 = vector.broadcast %251 : i32 to vector<8x1xi32>
    %253 = arith.select %247, %252, %245 : vector<8x1xi1>, vector<8x1xi32>
    %c3_i32_100 = arith.constant 3 : i32
    %254 = vector.broadcast %c3_i32_100 : i32 to vector<8x1xi32>
    %255 = arith.cmpi eq, %228, %254 : vector<8x1xi32>
    %c8_i32_101 = arith.constant 8 : i32
    %256 = arith.muli %arg0, %c8_i32_101 : i32
    %c3_i32_102 = arith.constant 3 : i32
    %257 = arith.addi %256, %c3_i32_102 : i32
    %258 = arith.index_cast %257 : i32 to index
    %259 = memref.load %arg3[%258] : memref<24xi32, #tpu.memory_space<smem>>
    %260 = vector.broadcast %259 : i32 to vector<8x1xi32>
    %261 = arith.select %255, %260, %253 : vector<8x1xi1>, vector<8x1xi32>
    %c4_i32_103 = arith.constant 4 : i32
    %262 = vector.broadcast %c4_i32_103 : i32 to vector<8x1xi32>
    %263 = arith.cmpi eq, %228, %262 : vector<8x1xi32>
    %c8_i32_104 = arith.constant 8 : i32
    %264 = arith.muli %arg0, %c8_i32_104 : i32
    %c4_i32_105 = arith.constant 4 : i32
    %265 = arith.addi %264, %c4_i32_105 : i32
    %266 = arith.index_cast %265 : i32 to index
    %267 = memref.load %arg3[%266] : memref<24xi32, #tpu.memory_space<smem>>
    %268 = vector.broadcast %267 : i32 to vector<8x1xi32>
    %269 = arith.select %263, %268, %261 : vector<8x1xi1>, vector<8x1xi32>
    %c5_i32_106 = arith.constant 5 : i32
    %270 = vector.broadcast %c5_i32_106 : i32 to vector<8x1xi32>
    %271 = arith.cmpi eq, %228, %270 : vector<8x1xi32>
    %c8_i32_107 = arith.constant 8 : i32
    %272 = arith.muli %arg0, %c8_i32_107 : i32
    %c5_i32_108 = arith.constant 5 : i32
    %273 = arith.addi %272, %c5_i32_108 : i32
    %274 = arith.index_cast %273 : i32 to index
    %275 = memref.load %arg3[%274] : memref<24xi32, #tpu.memory_space<smem>>
    %276 = vector.broadcast %275 : i32 to vector<8x1xi32>
    %277 = arith.select %271, %276, %269 : vector<8x1xi1>, vector<8x1xi32>
    %c6_i32_109 = arith.constant 6 : i32
    %278 = vector.broadcast %c6_i32_109 : i32 to vector<8x1xi32>
    %279 = arith.cmpi eq, %228, %278 : vector<8x1xi32>
    %c8_i32_110 = arith.constant 8 : i32
    %280 = arith.muli %arg0, %c8_i32_110 : i32
    %c6_i32_111 = arith.constant 6 : i32
    %281 = arith.addi %280, %c6_i32_111 : i32
    %282 = arith.index_cast %281 : i32 to index
    %283 = memref.load %arg3[%282] : memref<24xi32, #tpu.memory_space<smem>>
    %284 = vector.broadcast %283 : i32 to vector<8x1xi32>
    %285 = arith.select %279, %284, %277 : vector<8x1xi1>, vector<8x1xi32>
    %c7_i32_112 = arith.constant 7 : i32
    %286 = vector.broadcast %c7_i32_112 : i32 to vector<8x1xi32>
    %287 = arith.cmpi eq, %228, %286 : vector<8x1xi32>
    %c8_i32_113 = arith.constant 8 : i32
    %288 = arith.muli %arg0, %c8_i32_113 : i32
    %c7_i32_114 = arith.constant 7 : i32
    %289 = arith.addi %288, %c7_i32_114 : i32
    %290 = arith.index_cast %289 : i32 to index
    %291 = memref.load %arg3[%290] : memref<24xi32, #tpu.memory_space<smem>>
    %292 = vector.broadcast %291 : i32 to vector<8x1xi32>
    %293 = arith.select %287, %292, %285 : vector<8x1xi1>, vector<8x1xi32>
    %c0_i32_115 = arith.constant 0 : i32
    %294 = vector.broadcast %c0_i32_115 : i32 to vector<8x1xi32>
    %295 = arith.cmpi ne, %293, %294 : vector<8x1xi32>
    %296 = vector.shape_cast %295 : vector<8x1xi1> to vector<8x1xi1>
    %297 = vector.broadcast %296 : vector<8x1xi1> to vector<8x256xi1>
    %298 = arith.select %297, %195, %227 : vector<8x256xi1>, vector<8x256xf32>
    %c8_i32_116 = arith.constant 8 : i32
    %299 = arith.muli %arg0, %c8_i32_116 : i32
    %300 = tpu.assume_multiple %299, 8 : i32
    %301 = arith.index_cast %300 : i32 to index
    %c0_117 = arith.constant 0 : index
    %302 = vector.load %arg7[%301, %c0_117] : memref<32x256xf32, #tpu.memory_space<vmem>>, vector<8x256xf32>
    tpu.vector_store %arg7[%301, %c0_117], %298 {strides = array<i32>} : memref<32x256xf32, #tpu.memory_space<vmem>>, vector<8x256xf32>,
    return
  }
  func.func @transform_0(%arg0: i32, %arg1: memref<48xi32, #tpu.memory_space<smem>>, %arg2: memref<24xi32, #tpu.memory_space<smem>>, %arg3: memref<24xi32, #tpu.memory_space<smem>>) -> (i32, i32) {
    %c0_i32 = arith.constant 0 : i32
    %c0_i32_0 = arith.constant 0 : i32
    %c0_i32_1 = arith.constant 0 : i32
    return %c0_i32, %c0_i32_0 : i32, i32
  }
  func.func @transform_1(%arg0: i32, %arg1: memref<48xi32, #tpu.memory_space<smem>>, %arg2: memref<24xi32, #tpu.memory_space<smem>>, %arg3: memref<24xi32, #tpu.memory_space<smem>>) -> (i32, i32) {
    %c0_i32 = arith.constant 0 : i32
    %c0_i32_0 = arith.constant 0 : i32
    return %arg0, %c0_i32 : i32, i32
  }
  func.func @transform_2(%arg0: i32, %arg1: memref<48xi32, #tpu.memory_space<smem>>, %arg2: memref<24xi32, #tpu.memory_space<smem>>, %arg3: memref<24xi32, #tpu.memory_space<smem>>) -> (i32, i32) {
    %c0_i32 = arith.constant 0 : i32
    %c0_i32_0 = arith.constant 0 : i32
    %c0_i32_1 = arith.constant 0 : i32
    return %c0_i32, %c0_i32_0 : i32, i32
  }
  func.func @transform_3(%arg0: i32, %arg1: memref<48xi32, #tpu.memory_space<smem>>, %arg2: memref<24xi32, #tpu.memory_space<smem>>, %arg3: memref<24xi32, #tpu.memory_space<smem>>) -> (i32, i32) {
    %c0_i32 = arith.constant 0 : i32
    %c0_i32_0 = arith.constant 0 : i32
    %c0_i32_1 = arith.constant 0 : i32
    return %c0_i32, %c0_i32_0 : i32, i32
  }
}

</mosaic_0001>

<llo_original>
// kernel: tpu_custom_call.1
$region0: #{tpu_custom_call.1}
  #allocation0 [shape = 'u32[]', space=smem, size = 0x4, offset = 0x4, fixed_abs, tag = 'smem constant byte address 0x4 - core index']
  #allocation1 [shape = 'u32[72,128]{1,0:T(1,128)}', space=vmem, size = 0x9000, scoped, tag = 'internal scratch']
  #allocation2 [shape = 'f32[8,256]{1,0:T(8,128)}', space=vmem, size = 0x2000, scoped, tag = 'scratch operand']
  #allocation3 [shape = 's32[1]{0}', space=sflag, size = 0x4, scoped, tag = 'scoped memory for tpu_custom_call.1']
  #allocation4 [shape = 'u8[512]{0}', space=smem, size = 0x200, scoped, tag = 'prefetched SMEM operand 0']
  #allocation5 [shape = 'u8[512]{0}', space=smem, size = 0x200, scoped, tag = 'prefetched SMEM operand 1']
  #allocation6 [shape = 'u8[512]{0}', space=smem, size = 0x200, scoped, tag = 'prefetched SMEM operand 2']
  %s0 = inlined_call_operand.hbm [shape: s32[48], index: 0, kind: input, shape index: {}]
  %s1 = inlined_call_operand.hbm [shape: s32[24], index: 1, kind: input, shape index: {}]
  %s2 = inlined_call_operand.hbm [shape: s32[24], index: 2, kind: input, shape index: {}]
  %s3 = inlined_call_operand.vmem [shape: f32[1,256], index: 3, kind: input, shape index: {}]
  %s4 = inlined_call_operand.hbm [shape: f32[24,512], index: 4, kind: input, shape index: {}]
  %s5 = inlined_call_operand.hbm [shape: f32[128,512], index: 5, kind: input, shape index: {}]
  %s6 = inlined_call_operand.hbm [shape: f32[32,256], index: 6, kind: output, shape index: {}]
  %s7 = sld [smem:[#allocation0]]
  $region57: #{tpu_custom_call.1} parent=0
    _
  %s9 = ssub.s32 1, %s7
  %s10 = scalar_select 0, %s9, %s7
  %s12 = sshll.u32 %s0, 4
  %s13 = int_to_ptr.hbm [resolvable:$true] %s12
  %15 = dma.hbm_to_smem %s13, 16, [#allocation4], [#allocation3]
  %s17 = sshll.u32 %s1, 4
  %s18 = int_to_ptr.hbm [resolvable:$true] %s17
  %20 = dma.hbm_to_smem %s18, 16, [#allocation5], [#allocation3]
  %s22 = sshll.u32 %s2, 4
  %s23 = int_to_ptr.hbm [resolvable:$true] %s22
  %25 = dma.hbm_to_smem %s23, 16, [#allocation6], [#allocation3]
  %27 = dma.done [#allocation3], 48
  %28 = sfence
  $region1: #{tpu_custom_call.1} parent=0
    #allocation7 [shape = 'u8[32768]{0}', space=vmem, size = 0x8000, scoped, tag = 'input window, operand 4']
    #allocation8 [shape = 's32[2]{0}', space=sflag, size = 0x8, scoped, tag = 'scoped memory for tpu_custom_call.1']
    #allocation9 [shape = 's32[2]{0}', space=sflag, size = 0x8, scoped, tag = 'scoped memory for tpu_custom_call.1']
    #allocation10 [shape = 'u8[262144]{0}', space=vmem, size = 0x40000, scoped, tag = 'input window, operand 5, single buffered']
    #allocation11 [shape = 's32[1]{0}', space=sflag, size = 0x4, scoped, tag = 'scoped memory for tpu_custom_call.1']
    #allocation12 [shape = 'u8[32768]{0}', space=vmem, size = 0x8000, scoped, tag = 'output window, operand 0, single buffered']
    %29 = vsyncpa [#allocation8], 0
    %s30 = scalar_lea.sflag [#allocation8], 1
    %31 = vsyncpa %s30, 0
    %32 = vsyncpa [#allocation11], 0
    %33 = vsyncpa [#allocation9], 0
    loop: start=0, step=1, limit=5
    $region2: #{tpu_custom_call.1} parent=1 // loop_pre_header
      _
    $region3: #{tpu_custom_call.1} parent=1 // loop_header
      %s35 = sphi 0, %s39
      %p36 = scmp.ge.s32.totalorder %s35, 5
      %s43 = sphi 0, %s43
      %s45 = sphi 0, %s43
      %s46 = sphi 0, %s45
      %s60 = sphi 0, %s46
      %s66 = sphi 0, %s68
      %s69 = sphi 0, %s66
      %s70 = sphi 0, %s69
      %s86 = sphi 0, %s70
      %s90 = sphi 0, %s90
      %s92 = sphi 0, %s90
      %s93 = sphi 0, %s92
      %s107 = sphi 0, %s93
      %s111 = sphi 0, %s111
      %s113 = sphi 0, %s111
      %s114 = sphi 0, %s113
      %s128 = sphi 0, %s114
    $region4: #{tpu_custom_call.1} parent=1 // loop_header_branch
      %38 = sbr.rel (%p36) target = $region8
    $region5: #{tpu_custom_call.1} parent=1 // loop_body
      %s40 = ssub.s32 %s35, 1
      %s41 = ssub.s32 %s35, 2
      %s42 = sadd.s32 %s35, 1
      %s44 = sadd.s32 %s43, 1
      %p47 = scmp.eq.s32.totalorder %s35, 2
      %p48 = scmp.ne.s32.totalorder %s43, %s45
      %p49 = scmp.eq.s32.totalorder %s35, 0
      %p50 = por %p48, %p49
      %p51 = scmp.ne.s32.totalorder %s43, %s45
      %p52 = scmp.eq.s32.totalorder %s40, 2
      %p53 = por %p51, %p52
      %p54 = scmp.ne.s32.totalorder %s45, %s46
      %p55 = scmp.eq.s32.totalorder %s40, 0
      %p56 = por %p54, %p55
      %p57 = scmp.ne.s32.totalorder %s45, %s46
      %p58 = scmp.eq.s32.totalorder %s41, 2
      %p59 = por %p57, %p58
      %p61 = scmp.ne.s32.totalorder %s46, %s60
      %p62 = scmp.eq.s32.totalorder %s41, 0
      %p63 = por %p61, %p62
      %s64 = ssub.s32 %s35, %s42
      %p65 = scmp.eq.s32.totalorder %s64, 0
      %s67 = sadd.s32 %s66, 1
      %s68 = scalar_select %p65, %s66, %s67
      %p71 = pneg %p65
      %p72 = scmp.eq.s32.totalorder %s35, 2
      %p73 = por %p71, %p72
      %p74 = scmp.ne.s32.totalorder %s66, %s69
      %p75 = scmp.eq.s32.totalorder %s35, 0
      %p76 = por %p74, %p75
      %p77 = scmp.ne.s32.totalorder %s66, %s69
      %p78 = scmp.eq.s32.totalorder %s40, 2
      %p79 = por %p77, %p78
      %p80 = scmp.ne.s32.totalorder %s69, %s70
      %p81 = scmp.eq.s32.totalorder %s40, 0
      %p82 = por %p80, %p81
      %p83 = scmp.ne.s32.totalorder %s69, %s70
      %p84 = scmp.eq.s32.totalorder %s41, 2
      %p85 = por %p83, %p84
      %p87 = scmp.ne.s32.totalorder %s70, %s86
      %p88 = scmp.eq.s32.totalorder %s41, 0
      %p89 = por %p87, %p88
      %s91 = sadd.s32 %s90, 1
      %p94 = scmp.eq.s32.totalorder %s35, 2
      %p95 = scmp.ne.s32.totalorder %s90, %s92
      %p96 = scmp.eq.s32.totalorder %s35, 0
      %p97 = por %p95, %p96
      %p98 = scmp.ne.s32.totalorder %s90, %s92
      %p99 = scmp.eq.s32.totalorder %s40, 2
      %p100 = por %p98, %p99
      %p101 = scmp.ne.s32.totalorder %s92, %s93
      %p102 = scmp.eq.s32.totalorder %s40, 0
      %p103 = por %p101, %p102
      %p104 = scmp.ne.s32.totalorder %s92, %s93
      %p105 = scmp.eq.s32.totalorder %s41, 2
      %p106 = por %p104, %p105
      %p108 = scmp.ne.s32.totalorder %s93, %s107
      %p109 = scmp.eq.s32.totalorder %s41, 0
      %p110 = por %p108, %p109
      %s112 = sadd.s32 %s111, 1
      %p115 = scmp.eq.s32.totalorder %s35, 2
      %p116 = scmp.ne.s32.totalorder %s111, %s113
      %p117 = scmp.eq.s32.totalorder %s35, 0
      %p118 = por %p116, %p117
      %p119 = scmp.ne.s32.totalorder %s111, %s113
      %p120 = scmp.eq.s32.totalorder %s40, 2
      %p121 = por %p119, %p120
      %p122 = scmp.ne.s32.totalorder %s113, %s114
      %p123 = scmp.eq.s32.totalorder %s40, 0
      %p124 = por %p122, %p123
      %p125 = scmp.ne.s32.totalorder %s113, %s114
      %p126 = scmp.eq.s32.totalorder %s41, 2
      %p127 = por %p125, %p126
      %p129 = scmp.ne.s32.totalorder %s114, %s128
      %p130 = scmp.eq.s32.totalorder %s41, 0
      %p131 = por %p129, %p130
      %p132 = scmp.le.s32.totalorder 1, %s35
      %p133 = scmp.lt.s32.totalorder %s35, 4
      %p134 = pnand %p132, %p133
      %p135 = pneg %p134
      // Predicated region
      $region9: #{tpu_custom_call.1} parent=5 // pred_check
        _
      $region10: #{tpu_custom_call.1} parent=5 // pred_check_branch
        %137 = sbr.rel (%p134) target = $region12
      $region11: #{tpu_custom_call.1} parent=5 // pred_region
        %s138 = ssub.s32 %s35, 1
        // Predicated region
        $region13: #{tpu_custom_call.1} parent=11 // pred_check
          %p139 = pneg %p56
        $region14: #{tpu_custom_call.1} parent=11 // pred_check_branch
          %141 = sbr.rel (%p139) target = $region16
        $region15: #{tpu_custom_call.1} parent=11 // pred_region
          _
        $region16: #{tpu_custom_call.1} parent=11 // pred_fallthru
          _
        // Predicated region
        $region17: #{tpu_custom_call.1} parent=11 // pred_check
          %p142 = pneg %p103
        $region18: #{tpu_custom_call.1} parent=11 // pred_check_branch
          %144 = sbr.rel (%p142) target = $region20
        $region19: #{tpu_custom_call.1} parent=11 // pred_region
          %146 = vsyncadd [#allocation11], 0
          %s147 = sshll.u32 %s5, 4
          %s148 = int_to_ptr.hbm [resolvable:$true] %s147
          %s149 = sshll.u32 [#allocation10], 4
          %s150 = int_to_ptr.vmem [resolvable:$true] %s149
          %155 = dma.hbm_to_vmem [thread:$0]  %s148, 8192, %s150, [#allocation11], 512, 512, 32
        $region20: #{tpu_custom_call.1} parent=11 // pred_fallthru
          _
      $region12: #{tpu_custom_call.1} parent=5 // pred_fallthru
        _
      %p156 = scmp.lt.s32.totalorder %s35, 3
      // Predicated region
      $region21: #{tpu_custom_call.1} parent=5 // pred_check
        %p157 = pneg %p156
      $region22: #{tpu_custom_call.1} parent=5 // pred_check_branch
        %159 = sbr.rel (%p157) target = $region24
      $region23: #{tpu_custom_call.1} parent=5 // pred_region
        // Predicated region
        $region25: #{tpu_custom_call.1} parent=23 // pred_check
          %p160 = pneg %p76
        $region26: #{tpu_custom_call.1} parent=23 // pred_check_branch
          %162 = sbr.rel (%p160) target = $region28
        $region27: #{tpu_custom_call.1} parent=23 // pred_region
          %s163 = sand.u32 %s66, 1
          %s164 = scalar_lea.sflag [#allocation8], %s163
          %s165 = sand.u32 %s66, 1
          %s166 = smul.addr %s165, 32
          %s167 = scalar_lea.vmem [#allocation7], %s166
          %169 = vsyncadd %s164, 0
          %s170 = smul.addr %s35, 4
          %s171 = smul.addr %s170, 8
          %s172 = scalar_lea.hbm %s4, %s171
          %s174 = sshll.u32 %s172, 4
          %s175 = int_to_ptr.hbm [resolvable:$true] %s174
          %s176 = sshll.u32 %s167, 4
          %s177 = int_to_ptr.vmem [resolvable:$true] %s176
          %179 = dma.hbm_to_vmem [thread:$0]  %s175, 512, %s177, %s164
        $region28: #{tpu_custom_call.1} parent=23 // pred_fallthru
          _
      $region24: #{tpu_custom_call.1} parent=5 // pred_fallthru
        _
      %p180 = scmp.le.s32.totalorder 1, %s35
      %p181 = scmp.lt.s32.totalorder %s35, 4
      %p182 = pnand %p180, %p181
      %p183 = pneg %p182
      // Predicated region
      $region29: #{tpu_custom_call.1} parent=5 // pred_check
        _
      $region30: #{tpu_custom_call.1} parent=5 // pred_check_branch
        %185 = sbr.rel (%p182) target = $region32
      $region31: #{tpu_custom_call.1} parent=5 // pred_region
        %s186 = ssub.s32 %s35, 1
        %s187 = sand.u32 %s69, 1
        %s188 = scalar_lea.sflag [#allocation8], %s187
        %s189 = sand.u32 %s69, 1
        %s190 = smul.addr %s189, 32
        %s191 = scalar_lea.vmem [#allocation7], %s190
        // Predicated region
        $region33: #{tpu_custom_call.1} parent=31 // pred_check
          %p192 = pneg %p82
        $region34: #{tpu_custom_call.1} parent=31 // pred_check_branch
          %194 = sbr.rel (%p192) target = $region36
        $region35: #{tpu_custom_call.1} parent=31 // pred_region
          %196 = dma.done %s188, 512
        $region36: #{tpu_custom_call.1} parent=31 // pred_fallthru
          _
        // Predicated region
        $region37: #{tpu_custom_call.1} parent=31 // pred_check
          %p197 = pneg %p103
        $region38: #{tpu_custom_call.1} parent=31 // pred_check_branch
          %199 = sbr.rel (%p197) target = $region40
        $region39: #{tpu_custom_call.1} parent=31 // pred_region
          %201 = dma.done [#allocation11], 8192
        $region40: #{tpu_custom_call.1} parent=31 // pred_fallthru
          _
        %p202 = pneg %p56
        %p203 = pneg %p53
        %s204 = sand.u32 %s69, 1
        %s205 = scalar_lea.sflag [#allocation8], %s204
        %s206 = sand.u32 %s69, 1
        %s207 = smul.addr %s206, 32
        %s208 = scalar_lea.vmem [#allocation7], %s207
        %p209 = pneg %p82
        %p210 = pneg %p79
        %p211 = pneg %p103
        %p212 = pneg %p100
        %p213 = pneg %p124
        %p214 = pneg %p121
        %p215 = scmp.eq.s32.totalorder %s40, 0
        // Predicated region
        $region41: #{tpu_custom_call.1} parent=31 // pred_check
          %p216 = pneg %p215
        $region42: #{tpu_custom_call.1} parent=31 // pred_check_branch
          %218 = sbr.rel (%p216) target = $region44
        $region43: #{tpu_custom_call.1} parent=31 // pred_region
          %219 = vst [vmem:[#allocation12 + $0x30] sm:$0xff] 0.0
          %220 = vst [vmem:[#allocation12 + $0x38] sm:$0xff] 0.0
          %v221 = vld [vmem:[%s3] sm:$0x3]
          %v222 = vlaneseq
          %vm223 = vcmp.ge.s32.totalorder %v222, 0
          %vm224 = vcmp.lt.s32.totalorder %v222, 256
          %vm225 = vmand %vm223, %vm224
          %s226 = scalar_lea.vmem [#allocation12], 49
          %227 = vst.msk [vmem:[%s226] ss:$8 sm:$0x3] %vm225, %v221
          %228 = vst.msk [vmem:[%s226] ss:$8 sm:$0x0] %vm225, %v221
        $region44: #{tpu_custom_call.1} parent=31 // pred_fallthru
          _
        %s229 = smul.u32 %s40, 8
        %s230 = smul.u32 %s40, 16
        %s231 = sld [smem:[#allocation4 + %s230]]
        %s232 = sshra.s32 %s231, 3
        %s233 = sand.u32 %s231, 7
        %s234 = sshra.s32 %s231, 3
        %s235 = sand.u32 %s231, 7
        %s236 = smul.u32 %s232, 2
        %s237 = smul.u32 %s236, 8
        %s238 = sadd.s32 %s237, %s235
        %s239 = scalar_lea.vmem [#allocation12], %s238
        %v240 = vld [vmem:[%s239] ss:$8 sm:$0x3]
        %v241 = vadd.f32 %v240, 0.0
        %s242 = sadd.s32 %s230, 1
        %s243 = sld [smem:[#allocation4 + %s242]]
        %s244 = sshra.s32 %s243, 3
        %s245 = sand.u32 %s243, 7
        %s246 = sshra.s32 %s243, 3
        %s247 = sand.u32 %s243, 7
        %s248 = smul.u32 %s244, 2
        %s249 = smul.u32 %s248, 8
        %s250 = sadd.s32 %s249, %s247
        %s251 = scalar_lea.vmem [#allocation12], %s250
        %v252 = vld [vmem:[%s251] ss:$8 sm:$0x3]
        %v253 = vadd.f32 %v241, %v252
        %s254 = sld [smem:[#allocation5 + %s229]]
        %s255 = scvt.s32.f32 %s254
        %v256 = vstv %s255
        %v257 = vrcp.pop %v256
        %v258 = vmul.f32 %v256, %v257
        %v259 = vsub.f32 1.0, %v258
        %v260 = vmul.f32 %v257, %v259
        %v261 = vadd.f32 %v257, %v260
        %vm262 = vweird.f32 %v256
        %vm263 = vweird.f32 %v257
        %vm264 = vmor %vm262, %vm263
        %v265 = vsel %vm264, %v257, %v261
        %v266 = vand.u32 2147483647, %v256
        %vm267 = vcmp.eq.f32.partialorder %v266, 8.507059e+37
        %v268 = vand.u32 %v256, 2147483648
        %v269 = vor.u32 1.1754944e-38, %v268
        %v270 = vsel %vm267, %v269, %v265
        %s271 = vtos %v270
        %v272 = vstv %s271
        %v273 = vmul.f32 %v253, %v272
        %v274 = vlaneseq
        %vm275 = vcmp.ge.s32.totalorder %v274, 0
        %vm276 = vcmp.lt.s32.totalorder %v274, 256
        %vm277 = vmand %vm275, %vm276
        %278 = vst.msk [vmem:[#allocation2] ss:$8 sm:$0x3] %vm277, %v273
        %279 = vst.msk [vmem:[#allocation2] ss:$8 sm:$0x0] %vm277, %v273
        %s280 = sadd.s32 %s229, 1
        %s281 = smul.u32 %s280, 2
        %s282 = sld [smem:[#allocation4 + %s281]]
        %s283 = sshra.s32 %s282, 3
        %s284 = sand.u32 %s282, 7
        %s285 = sshra.s32 %s282, 3
        %s286 = sand.u32 %s282, 7
        %s287 = smul.u32 %s283, 2
        %s288 = smul.u32 %s287, 8
        %s289 = sadd.s32 %s288, %s286
        %s290 = scalar_lea.vmem [#allocation12], %s289
        %v291 = vld [vmem:[%s290] ss:$8 sm:$0x3]
        %v292 = vadd.f32 %v291, 0.0
        %s293 = sadd.s32 %s281, 1
        %s294 = sld [smem:[#allocation4 + %s293]]
        %s295 = sshra.s32 %s294, 3
        %s296 = sand.u32 %s294, 7
        %s297 = sshra.s32 %s294, 3
        %s298 = sand.u32 %s294, 7
        %s299 = smul.u32 %s295, 2
        %s300 = smul.u32 %s299, 8
        %s301 = sadd.s32 %s300, %s298
        %s302 = scalar_lea.vmem [#allocation12], %s301
        %v303 = vld [vmem:[%s302] ss:$8 sm:$0x3]
        %v304 = vadd.f32 %v292, %v303
        %s305 = sld [smem:[#allocation5 + %s280]]
        %s306 = scvt.s32.f32 %s305
        %v307 = vstv %s306
        %v308 = vrcp.pop %v307
        %v309 = vmul.f32 %v307, %v308
        %v310 = vsub.f32 1.0, %v309
        %v311 = vmul.f32 %v308, %v310
        %v312 = vadd.f32 %v308, %v311
        %vm313 = vweird.f32 %v307
        %vm314 = vweird.f32 %v308
        %vm315 = vmor %vm313, %vm314
        %v316 = vsel %vm315, %v308, %v312
        %v317 = vand.u32 2147483647, %v307
        %vm318 = vcmp.eq.f32.partialorder %v317, 8.507059e+37
        %v319 = vand.u32 %v307, 2147483648
        %v320 = vor.u32 1.1754944e-38, %v319
        %v321 = vsel %vm318, %v320, %v316
        %s322 = vtos %v321
        %v323 = vstv %s322
        %v324 = vmul.f32 %v304, %v323
        %s325 = scalar_lea.vmem [#allocation2], 1
        %326 = vst.msk [vmem:[%s325] ss:$8 sm:$0x3] %vm277, %v324
        %327 = vst.msk [vmem:[%s325] ss:$8 sm:$0x0] %vm277, %v324
        %s328 = sadd.s32 %s229, 2
        %s329 = smul.u32 %s328, 2
        %s330 = sld [smem:[#allocation4 + %s329]]
        %s331 = sshra.s32 %s330, 3
        %s332 = sand.u32 %s330, 7
        %s333 = sshra.s32 %s330, 3
        %s334 = sand.u32 %s330, 7
        %s335 = smul.u32 %s331, 2
        %s336 = smul.u32 %s335, 8
        %s337 = sadd.s32 %s336, %s334
        %s338 = scalar_lea.vmem [#allocation12], %s337
        %v339 = vld [vmem:[%s338] ss:$8 sm:$0x3]
        %v340 = vadd.f32 %v339, 0.0
        %s341 = sadd.s32 %s329, 1
        %s342 = sld [smem:[#allocation4 + %s341]]
        %s343 = sshra.s32 %s342, 3
        %s344 = sand.u32 %s342, 7
        %s345 = sshra.s32 %s342, 3
        %s346 = sand.u32 %s342, 7
        %s347 = smul.u32 %s343, 2
        %s348 = smul.u32 %s347, 8
        %s349 = sadd.s32 %s348, %s346
        %s350 = scalar_lea.vmem [#allocation12], %s349
        %v351 = vld [vmem:[%s350] ss:$8 sm:$0x3]
        %v352 = vadd.f32 %v340, %v351
        %s353 = sld [smem:[#allocation5 + %s328]]
        %s354 = scvt.s32.f32 %s353
        %v355 = vstv %s354
        %v356 = vrcp.pop %v355
        %v357 = vmul.f32 %v355, %v356
        %v358 = vsub.f32 1.0, %v357
        %v359 = vmul.f32 %v356, %v358
        %v360 = vadd.f32 %v356, %v359
        %vm361 = vweird.f32 %v355
        %vm362 = vweird.f32 %v356
        %vm363 = vmor %vm361, %vm362
        %v364 = vsel %vm363, %v356, %v360
        %v365 = vand.u32 2147483647, %v355
        %vm366 = vcmp.eq.f32.partialorder %v365, 8.507059e+37
        %v367 = vand.u32 %v355, 2147483648
        %v368 = vor.u32 1.1754944e-38, %v367
        %v369 = vsel %vm366, %v368, %v364
        %s370 = vtos %v369
        %v371 = vstv %s370
        %v372 = vmul.f32 %v352, %v371
        %s373 = scalar_lea.vmem [#allocation2], 2
        %374 = vst.msk [vmem:[%s373] ss:$8 sm:$0x3] %vm277, %v372
        %375 = vst.msk [vmem:[%s373] ss:$8 sm:$0x0] %vm277, %v372
        %s376 = sadd.s32 %s229, 3
        %s377 = smul.u32 %s376, 2
        %s378 = sld [smem:[#allocation4 + %s377]]
        %s379 = sshra.s32 %s378, 3
        %s380 = sand.u32 %s378, 7
        %s381 = sshra.s32 %s378, 3
        %s382 = sand.u32 %s378, 7
        %s383 = smul.u32 %s379, 2
        %s384 = smul.u32 %s383, 8
        %s385 = sadd.s32 %s384, %s382
        %s386 = scalar_lea.vmem [#allocation12], %s385
        %v387 = vld [vmem:[%s386] ss:$8 sm:$0x3]
        %v388 = vadd.f32 %v387, 0.0
        %s389 = sadd.s32 %s377, 1
        %s390 = sld [smem:[#allocation4 + %s389]]
        %s391 = sshra.s32 %s390, 3
        %s392 = sand.u32 %s390, 7
        %s393 = sshra.s32 %s390, 3
        %s394 = sand.u32 %s390, 7
        %s395 = smul.u32 %s391, 2
        %s396 = smul.u32 %s395, 8
        %s397 = sadd.s32 %s396, %s394
        %s398 = scalar_lea.vmem [#allocation12], %s397
        %v399 = vld [vmem:[%s398] ss:$8 sm:$0x3]
        %v400 = vadd.f32 %v388, %v399
        %s401 = sld [smem:[#allocation5 + %s376]]
        %s402 = scvt.s32.f32 %s401
        %v403 = vstv %s402
        %v404 = vrcp.pop %v403
        %v405 = vmul.f32 %v403, %v404
        %v406 = vsub.f32 1.0, %v405
        %v407 = vmul.f32 %v404, %v406
        %v408 = vadd.f32 %v404, %v407
        %vm409 = vweird.f32 %v403
        %vm410 = vweird.f32 %v404
        %vm411 = vmor %vm409, %vm410
        %v412 = vsel %vm411, %v404, %v408
        %v413 = vand.u32 2147483647, %v403
        %vm414 = vcmp.eq.f32.partialorder %v413, 8.507059e+37
        %v415 = vand.u32 %v403, 2147483648
        %v416 = vor.u32 1.1754944e-38, %v415
        %v417 = vsel %vm414, %v416, %v412
        %s418 = vtos %v417
        %v419 = vstv %s418
        %v420 = vmul.f32 %v400, %v419
        %s421 = scalar_lea.vmem [#allocation2], 3
        %422 = vst.msk [vmem:[%s421] ss:$8 sm:$0x3] %vm277, %v420
        %423 = vst.msk [vmem:[%s421] ss:$8 sm:$0x0] %vm277, %v420
        %s424 = sadd.s32 %s229, 4
        %s425 = smul.u32 %s424, 2
        %s426 = sld [smem:[#allocation4 + %s425]]
        %s427 = sshra.s32 %s426, 3
        %s428 = sand.u32 %s426, 7
        %s429 = sshra.s32 %s426, 3
        %s430 = sand.u32 %s426, 7
        %s431 = smul.u32 %s427, 2
        %s432 = smul.u32 %s431, 8
        %s433 = sadd.s32 %s432, %s430
        %s434 = scalar_lea.vmem [#allocation12], %s433
        %v435 = vld [vmem:[%s434] ss:$8 sm:$0x3]
        %v436 = vadd.f32 %v435, 0.0
        %s437 = sadd.s32 %s425, 1
        %s438 = sld [smem:[#allocation4 + %s437]]
        %s439 = sshra.s32 %s438, 3
        %s440 = sand.u32 %s438, 7
        %s441 = sshra.s32 %s438, 3
        %s442 = sand.u32 %s438, 7
        %s443 = smul.u32 %s439, 2
        %s444 = smul.u32 %s443, 8
        %s445 = sadd.s32 %s444, %s442
        %s446 = scalar_lea.vmem [#allocation12], %s445
        %v447 = vld [vmem:[%s446] ss:$8 sm:$0x3]
        %v448 = vadd.f32 %v436, %v447
        %s449 = sld [smem:[#allocation5 + %s424]]
        %s450 = scvt.s32.f32 %s449
        %v451 = vstv %s450
        %v452 = vrcp.pop %v451
        %v453 = vmul.f32 %v451, %v452
        %v454 = vsub.f32 1.0, %v453
        %v455 = vmul.f32 %v452, %v454
        %v456 = vadd.f32 %v452, %v455
        %vm457 = vweird.f32 %v451
        %vm458 = vweird.f32 %v452
        %vm459 = vmor %vm457, %vm458
        %v460 = vsel %vm459, %v452, %v456
        %v461 = vand.u32 2147483647, %v451
        %vm462 = vcmp.eq.f32.partialorder %v461, 8.507059e+37
        %v463 = vand.u32 %v451, 2147483648
        %v464 = vor.u32 1.1754944e-38, %v463
        %v465 = vsel %vm462, %v464, %v460
        %s466 = vtos %v465
        %v467 = vstv %s466
        %v468 = vmul.f32 %v448, %v467
        %s469 = scalar_lea.vmem [#allocation2], 4
        %470 = vst.msk [vmem:[%s469] ss:$8 sm:$0x3] %vm277, %v468
        %471 = vst.msk [vmem:[%s469] ss:$8 sm:$0x0] %vm277, %v468
        %s472 = sadd.s32 %s229, 5
        %s473 = smul.u32 %s472, 2
        %s474 = sld [smem:[#allocation4 + %s473]]
        %s475 = sshra.s32 %s474, 3
        %s476 = sand.u32 %s474, 7
        %s477 = sshra.s32 %s474, 3
        %s478 = sand.u32 %s474, 7
        %s479 = smul.u32 %s475, 2
        %s480 = smul.u32 %s479, 8
        %s481 = sadd.s32 %s480, %s478
        %s482 = scalar_lea.vmem [#allocation12], %s481
        %v483 = vld [vmem:[%s482] ss:$8 sm:$0x3]
        %v484 = vadd.f32 %v483, 0.0
        %s485 = sadd.s32 %s473, 1
        %s486 = sld [smem:[#allocation4 + %s485]]
        %s487 = sshra.s32 %s486, 3
        %s488 = sand.u32 %s486, 7
        %s489 = sshra.s32 %s486, 3
        %s490 = sand.u32 %s486, 7
        %s491 = smul.u32 %s487, 2
        %s492 = smul.u32 %s491, 8
        %s493 = sadd.s32 %s492, %s490
        %s494 = scalar_lea.vmem [#allocation12], %s493
        %v495 = vld [vmem:[%s494] ss:$8 sm:$0x3]
        %v496 = vadd.f32 %v484, %v495
        %s497 = sld [smem:[#allocation5 + %s472]]
        %s498 = scvt.s32.f32 %s497
        %v499 = vstv %s498
        %v500 = vrcp.pop %v499
        %v501 = vmul.f32 %v499, %v500
        %v502 = vsub.f32 1.0, %v501
        %v503 = vmul.f32 %v500, %v502
        %v504 = vadd.f32 %v500, %v503
        %vm505 = vweird.f32 %v499
        %vm506 = vweird.f32 %v500
        %vm507 = vmor %vm505, %vm506
        %v508 = vsel %vm507, %v500, %v504
        %v509 = vand.u32 2147483647, %v499
        %vm510 = vcmp.eq.f32.partialorder %v509, 8.507059e+37
        %v511 = vand.u32 %v499, 2147483648
        %v512 = vor.u32 1.1754944e-38, %v511
        %v513 = vsel %vm510, %v512, %v508
        %s514 = vtos %v513
        %v515 = vstv %s514
        %v516 = vmul.f32 %v496, %v515
        %s517 = scalar_lea.vmem [#allocation2], 5
        %518 = vst.msk [vmem:[%s517] ss:$8 sm:$0x3] %vm277, %v516
        %519 = vst.msk [vmem:[%s517] ss:$8 sm:$0x0] %vm277, %v516
        %s520 = sadd.s32 %s229, 6
        %s521 = smul.u32 %s520, 2
        %s522 = sld [smem:[#allocation4 + %s521]]
        %s523 = sshra.s32 %s522, 3
        %s524 = sand.u32 %s522, 7
        %s525 = sshra.s32 %s522, 3
        %s526 = sand.u32 %s522, 7
        %s527 = smul.u32 %s523, 2
        %s528 = smul.u32 %s527, 8
        %s529 = sadd.s32 %s528, %s526
        %s530 = scalar_lea.vmem [#allocation12], %s529
        %v531 = vld [vmem:[%s530] ss:$8 sm:$0x3]
        %v532 = vadd.f32 %v531, 0.0
        %s533 = sadd.s32 %s521, 1
        %s534 = sld [smem:[#allocation4 + %s533]]
        %s535 = sshra.s32 %s534, 3
        %s536 = sand.u32 %s534, 7
        %s537 = sshra.s32 %s534, 3
        %s538 = sand.u32 %s534, 7
        %s539 = smul.u32 %s535, 2
        %s540 = smul.u32 %s539, 8
        %s541 = sadd.s32 %s540, %s538
        %s542 = scalar_lea.vmem [#allocation12], %s541
        %v543 = vld [vmem:[%s542] ss:$8 sm:$0x3]
        %v544 = vadd.f32 %v532, %v543
        %s545 = sld [smem:[#allocation5 + %s520]]
        %s546 = scvt.s32.f32 %s545
        %v547 = vstv %s546
        %v548 = vrcp.pop %v547
        %v549 = vmul.f32 %v547, %v548
        %v550 = vsub.f32 1.0, %v549
        %v551 = vmul.f32 %v548, %v550
        %v552 = vadd.f32 %v548, %v551
        %vm553 = vweird.f32 %v547
        %vm554 = vweird.f32 %v548
        %vm555 = vmor %vm553, %vm554
        %v556 = vsel %vm555, %v548, %v552
        %v557 = vand.u32 2147483647, %v547
        %vm558 = vcmp.eq.f32.partialorder %v557, 8.507059e+37
        %v559 = vand.u32 %v547, 2147483648
        %v560 = vor.u32 1.1754944e-38, %v559
        %v561 = vsel %vm558, %v560, %v556
        %s562 = vtos %v561
        %v563 = vstv %s562
        %v564 = vmul.f32 %v544, %v563
        %s565 = scalar_lea.vmem [#allocation2], 6
        %566 = vst.msk [vmem:[%s565] ss:$8 sm:$0x3] %vm277, %v564
        %567 = vst.msk [vmem:[%s565] ss:$8 sm:$0x0] %vm277, %v564
        %s568 = sadd.s32 %s229, 7
        %s569 = smul.u32 %s568, 2
        %s570 = sld [smem:[#allocation4 + %s569]]
        %s571 = sshra.s32 %s570, 3
        %s572 = sand.u32 %s570, 7
        %s573 = sshra.s32 %s570, 3
        %s574 = sand.u32 %s570, 7
        %s575 = smul.u32 %s571, 2
        %s576 = smul.u32 %s575, 8
        %s577 = sadd.s32 %s576, %s574
        %s578 = scalar_lea.vmem [#allocation12], %s577
        %v579 = vld [vmem:[%s578] ss:$8 sm:$0x3]
        %v580 = vadd.f32 %v579, 0.0
        %s581 = sadd.s32 %s569, 1
        %s582 = sld [smem:[#allocation4 + %s581]]
        %s583 = sshra.s32 %s582, 3
        %s584 = sand.u32 %s582, 7
        %s585 = sshra.s32 %s582, 3
        %s586 = sand.u32 %s582, 7
        %s587 = smul.u32 %s583, 2
        %s588 = smul.u32 %s587, 8
        %s589 = sadd.s32 %s588, %s586
        %s590 = scalar_lea.vmem [#allocation12], %s589
        %v591 = vld [vmem:[%s590] ss:$8 sm:$0x3]
        %v592 = vadd.f32 %v580, %v591
        %s593 = sld [smem:[#allocation5 + %s568]]
        %s594 = scvt.s32.f32 %s593
        %v595 = vstv %s594
        %v596 = vrcp.pop %v595
        %v597 = vmul.f32 %v595, %v596
        %v598 = vsub.f32 1.0, %v597
        %v599 = vmul.f32 %v596, %v598
        %v600 = vadd.f32 %v596, %v599
        %vm601 = vweird.f32 %v595
        %vm602 = vweird.f32 %v596
        %vm603 = vmor %vm601, %vm602
        %v604 = vsel %vm603, %v596, %v600
        %v605 = vand.u32 2147483647, %v595
        %vm606 = vcmp.eq.f32.partialorder %v605, 8.507059e+37
        %v607 = vand.u32 %v595, 2147483648
        %v608 = vor.u32 1.1754944e-38, %v607
        %v609 = vsel %vm606, %v608, %v604
        %s610 = vtos %v609
        %v611 = vstv %s610
        %v612 = vmul.f32 %v592, %v611
        %s613 = scalar_lea.vmem [#allocation2], 7
        %614 = vst.msk [vmem:[%s613] ss:$8 sm:$0x3] %vm277, %v612
        %615 = vst.msk [vmem:[%s613] ss:$8 sm:$0x0] %vm277, %v612
        %v616 = vld [vmem:[#allocation2] sm:$0xff]
        %v617 = vld [vmem:[#allocation2 + $0x8] sm:$0xff]
        %v618 = vld [vmem:[%s191] sm:$0xff]
        %v619 = vld [vmem:[%s191 + $0x8] sm:$0xff]
        %v620 = vld [vmem:[%s191 + $0x10] sm:$0xff]
        %v621 = vld [vmem:[%s191 + $0x18] sm:$0xff]
        %v622 = vld [vmem:[#allocation10] sm:$0xff]
        %v623 = vld [vmem:[#allocation10 + $0x8] sm:$0xff]
        %v624 = vld [vmem:[#allocation10 + $0x10] sm:$0xff]
        %v625 = vld [vmem:[#allocation10 + $0x18] sm:$0xff]
        %v626 = vld [vmem:[#allocation10 + $0x20] sm:$0xff]
        %v627 = vld [vmem:[#allocation10 + $0x28] sm:$0xff]
        %v628 = vld [vmem:[#allocation10 + $0x30] sm:$0xff]
        %v629 = vld [vmem:[#allocation10 + $0x38] sm:$0xff]
        %v630 = vld [vmem:[#allocation10 + $0x40] sm:$0xff]
        %v631 = vld [vmem:[#allocation10 + $0x48] sm:$0xff]
        %v632 = vld [vmem:[#allocation10 + $0x50] sm:$0xff]
        %v633 = vld [vmem:[#allocation10 + $0x58] sm:$0xff]
        %v634 = vld [vmem:[#allocation10 + $0x60] sm:$0xff]
        %v635 = vld [vmem:[#allocation10 + $0x68] sm:$0xff]
        %v636 = vld [vmem:[#allocation10 + $0x70] sm:$0xff]
        %v637 = vld [vmem:[#allocation10 + $0x78] sm:$0xff]
        %v638 = vld [vmem:[#allocation10 + $0x80] sm:$0xff]
        %v639 = vld [vmem:[#allocation10 + $0x88] sm:$0xff]
        %v640 = vld [vmem:[#allocation10 + $0x90] sm:$0xff]
        %v641 = vld [vmem:[#allocation10 + $0x98] sm:$0xff]
        %v642 = vld [vmem:[#allocation10 + $0xa0] sm:$0xff]
        %v643 = vld [vmem:[#allocation10 + $0xa8] sm:$0xff]
        %v644 = vld [vmem:[#allocation10 + $0xb0] sm:$0xff]
        %v645 = vld [vmem:[#allocation10 + $0xb8] sm:$0xff]
        %v646 = vld [vmem:[#allocation10 + $0xc0] sm:$0xff]
        %v647 = vld [vmem:[#allocation10 + $0xc8] sm:$0xff]
        %v648 = vld [vmem:[#allocation10 + $0xd0] sm:$0xff]
        %v649 = vld [vmem:[#allocation10 + $0xd8] sm:$0xff]
        %v650 = vld [vmem:[#allocation10 + $0xe0] sm:$0xff]
        %v651 = vld [vmem:[#allocation10 + $0xe8] sm:$0xff]
        %v652 = vld [vmem:[#allocation10 + $0xf0] sm:$0xff]
        %v653 = vld [vmem:[#allocation10 + $0xf8] sm:$0xff]
        %v654 = vld [vmem:[#allocation10 + $0x100] sm:$0xff]
        %v655 = vld [vmem:[#allocation10 + $0x108] sm:$0xff]
        %v656 = vld [vmem:[#allocation10 + $0x110] sm:$0xff]
        %v657 = vld [vmem:[#allocation10 + $0x118] sm:$0xff]
        %v658 = vld [vmem:[#allocation10 + $0x120] sm:$0xff]
        %v659 = vld [vmem:[#allocation10 + $0x128] sm:$0xff]
        %v660 = vld [vmem:[#allocation10 + $0x130] sm:$0xff]
        %v661 = vld [vmem:[#allocation10 + $0x138] sm:$0xff]
        %v662 = vld [vmem:[#allocation10 + $0x140] sm:$0xff]
        %v663 = vld [vmem:[#allocation10 + $0x148] sm:$0xff]
        %v664 = vld [vmem:[#allocation10 + $0x150] sm:$0xff]
        %v665 = vld [vmem:[#allocation10 + $0x158] sm:$0xff]
        %v666 = vld [vmem:[#allocation10 + $0x160] sm:$0xff]
        %v667 = vld [vmem:[#allocation10 + $0x168] sm:$0xff]
        %v668 = vld [vmem:[#allocation10 + $0x170] sm:$0xff]
        %v669 = vld [vmem:[#allocation10 + $0x178] sm:$0xff]
        %v670 = vld [vmem:[#allocation10 + $0x180] sm:$0xff]
        %v671 = vld [vmem:[#allocation10 + $0x188] sm:$0xff]
        %v672 = vld [vmem:[#allocation10 + $0x190] sm:$0xff]
        %v673 = vld [vmem:[#allocation10 + $0x198] sm:$0xff]
        %v674 = vld [vmem:[#allocation10 + $0x1a0] sm:$0xff]
        %v675 = vld [vmem:[#allocation10 + $0x1a8] sm:$0xff]
        %v676 = vld [vmem:[#allocation10 + $0x1b0] sm:$0xff]
        %v677 = vld [vmem:[#allocation10 + $0x1b8] sm:$0xff]
        %v678 = vld [vmem:[#allocation10 + $0x1c0] sm:$0xff]
        %v679 = vld [vmem:[#allocation10 + $0x1c8] sm:$0xff]
        %v680 = vld [vmem:[#allocation10 + $0x1d0] sm:$0xff]
        %v681 = vld [vmem:[#allocation10 + $0x1d8] sm:$0xff]
        %v682 = vld [vmem:[#allocation10 + $0x1e0] sm:$0xff]
        %v683 = vld [vmem:[#allocation10 + $0x1e8] sm:$0xff]
        %v684 = vld [vmem:[#allocation10 + $0x1f0] sm:$0xff]
        %v685 = vld [vmem:[#allocation10 + $0x1f8] sm:$0xff]
        %686 = vmatpush.msra.mxu0 %v682
        %687 = vmatpush.msra.mxu0 %v678
        %688 = vmatpush.msra.mxu0 %v674
        %689 = vmatpush.msra.mxu0 %v670
        %690 = vmatpush.msra.mxu0 %v666
        %691 = vmatpush.msra.mxu0 %v662
        %692 = vmatpush.msra.mxu0 %v658
        %693 = vmatpush.msra.mxu0 %v654
        %694 = vmatpush.msra.mxu0 %v650
        %695 = vmatpush.msra.mxu0 %v646
        %696 = vmatpush.msra.mxu0 %v642
        %697 = vmatpush.msra.mxu0 %v638
        %698 = vmatpush.msra.mxu0 %v634
        %699 = vmatpush.msra.mxu0 %v630
        %700 = vmatpush.msra.mxu0 %v626
        %701 = vmatpush.msra.mxu0 %v622
        %702 = vmatmul.f32.gmra.mxu0 %v616
        %v703 = vpop.f32.mrf.mxu0
        %v704 = vadd.f32 0.0, %v703
        %705 = vdwg.mxu0
        %706 = vmatpush.msra.mxu0 %v683
        %707 = vmatpush.msra.mxu0 %v679
        %708 = vmatpush.msra.mxu0 %v675
        %709 = vmatpush.msra.mxu0 %v671
        %710 = vmatpush.msra.mxu0 %v667
        %711 = vmatpush.msra.mxu0 %v663
        %712 = vmatpush.msra.mxu0 %v659
        %713 = vmatpush.msra.mxu0 %v655
        %714 = vmatpush.msra.mxu0 %v651
        %715 = vmatpush.msra.mxu0 %v647
        %716 = vmatpush.msra.mxu0 %v643
        %717 = vmatpush.msra.mxu0 %v639
        %718 = vmatpush.msra.mxu0 %v635
        %719 = vmatpush.msra.mxu0 %v631
        %720 = vmatpush.msra.mxu0 %v627
        %721 = vmatpush.msra.mxu0 %v623
        %722 = vmatmul.f32.gmra.mxu0 %v616
        %v723 = vpop.f32.mrf.mxu0
        %v724 = vadd.f32 0.0, %v723
        %725 = vdwg.mxu0
        %726 = vmatpush.msra.mxu0 %v684
        %727 = vmatpush.msra.mxu0 %v680
        %728 = vmatpush.msra.mxu0 %v676
        %729 = vmatpush.msra.mxu0 %v672
        %730 = vmatpush.msra.mxu0 %v668
        %731 = vmatpush.msra.mxu0 %v664
        %732 = vmatpush.msra.mxu0 %v660
        %733 = vmatpush.msra.mxu0 %v656
        %734 = vmatpush.msra.mxu0 %v652
        %735 = vmatpush.msra.mxu0 %v648
        %736 = vmatpush.msra.mxu0 %v644
        %737 = vmatpush.msra.mxu0 %v640
        %738 = vmatpush.msra.mxu0 %v636
        %739 = vmatpush.msra.mxu0 %v632
        %740 = vmatpush.msra.mxu0 %v628
        %741 = vmatpush.msra.mxu0 %v624
        %742 = vmatmul.f32.gmra.mxu0 %v616
        %v743 = vpop.f32.mrf.mxu0
        %v744 = vadd.f32 0.0, %v743
        %745 = vdwg.mxu0
        %746 = vmatpush.msra.mxu0 %v685
        %747 = vmatpush.msra.mxu0 %v681
        %748 = vmatpush.msra.mxu0 %v677
        %749 = vmatpush.msra.mxu0 %v673
        %750 = vmatpush.msra.mxu0 %v669
        %751 = vmatpush.msra.mxu0 %v665
        %752 = vmatpush.msra.mxu0 %v661
        %753 = vmatpush.msra.mxu0 %v657
        %754 = vmatpush.msra.mxu0 %v653
        %755 = vmatpush.msra.mxu0 %v649
        %756 = vmatpush.msra.mxu0 %v645
        %757 = vmatpush.msra.mxu0 %v641
        %758 = vmatpush.msra.mxu0 %v637
        %759 = vmatpush.msra.mxu0 %v633
        %760 = vmatpush.msra.mxu0 %v629
        %761 = vmatpush.msra.mxu0 %v625
        %762 = vmatmul.f32.gmra.mxu0 %v616
        %v763 = vpop.f32.mrf.mxu0
        %v764 = vadd.f32 0.0, %v763
        %765 = vdwg.mxu0
        %v766 = vadd.f32 %v618, %v704
        %v767 = vadd.f32 %v619, %v724
        %v768 = vadd.f32 %v620, %v744
        %v769 = vadd.f32 %v621, %v764
        %v770 = vxor.u32 %v766, 2147483648
        %v771 = vmul.f32 %v770, 1.442695
        %v772 = vpow.pop %v771
        %v773 = vadd.f32 %v772, 1.0
        %v774 = vrcp.pop %v773
        %v775 = vmul.f32 %v773, %v774
        %v776 = vsub.f32 1.0, %v775
        %v777 = vmul.f32 %v774, %v776
        %v778 = vadd.f32 %v774, %v777
        %vm779 = vweird.f32 %v773
        %vm780 = vweird.f32 %v774
        %vm781 = vmor %vm779, %vm780
        %v782 = vsel %vm781, %v774, %v778
        %v783 = vand.u32 2147483647, %v773
        %vm784 = vcmp.eq.f32.partialorder %v783, 8.507059e+37
        %v785 = vand.u32 %v773, 2147483648
        %v786 = vor.u32 1.1754944e-38, %v785
        %v787 = vsel %vm784, %v786, %v782
        %v788 = vmul.f32 1.0, %v787
        %v789 = vxor.u32 %v767, 2147483648
        %v790 = vmul.f32 %v789, 1.442695
        %v791 = vpow.pop %v790
        %v792 = vadd.f32 %v791, 1.0
        %v793 = vrcp.pop %v792
        %v794 = vmul.f32 %v792, %v793
        %v795 = vsub.f32 1.0, %v794
        %v796 = vmul.f32 %v793, %v795
        %v797 = vadd.f32 %v793, %v796
        %vm798 = vweird.f32 %v792
        %vm799 = vweird.f32 %v793
        %vm800 = vmor %vm798, %vm799
        %v801 = vsel %vm800, %v793, %v797
        %v802 = vand.u32 2147483647, %v792
        %vm803 = vcmp.eq.f32.partialorder %v802, 8.507059e+37
        %v804 = vand.u32 %v792, 2147483648
        %v805 = vor.u32 1.1754944e-38, %v804
        %v806 = vsel %vm803, %v805, %v801
        %v807 = vmul.f32 1.0, %v806
        %v808 = vtanh.pop %v768
        %v809 = vxor.u32 %v769, 2147483648
        %v810 = vmul.f32 %v809, 1.442695
        %v811 = vpow.pop %v810
        %v812 = vadd.f32 %v811, 1.0
        %v813 = vrcp.pop %v812
        %v814 = vmul.f32 %v812, %v813
        %v815 = vsub.f32 1.0, %v814
        %v816 = vmul.f32 %v813, %v815
        %v817 = vadd.f32 %v813, %v816
        %vm818 = vweird.f32 %v812
        %vm819 = vweird.f32 %v813
        %vm820 = vmor %vm818, %vm819
        %v821 = vsel %vm820, %v813, %v817
        %v822 = vand.u32 2147483647, %v812
        %vm823 = vcmp.eq.f32.partialorder %v822, 8.507059e+37
        %v824 = vand.u32 %v812, 2147483648
        %v825 = vor.u32 1.1754944e-38, %v824
        %v826 = vsel %vm823, %v825, %v821
        %v827 = vmul.f32 1.0, %v826
        %v828 = vmul.f32 %v807, %v617
        %v829 = vmul.f32 %v788, %v808
        %v830 = vadd.f32 %v828, %v829
        %v831 = vtanh.pop %v830
        %v832 = vmul.f32 %v827, %v831
        %v833 = vlaneseq
        %v834 = vshrl.u32 %v833, 7
        %vm835 = vcmp.eq.s32.totalorder %v834, 0
        %s836 = sld [smem:[#allocation6 + %s229]]
        %v837 = vstv %s836
        %v838 = vsel %vm835, %v837, 0
        %vm839 = vcmp.eq.s32.totalorder %v834, 1
        %s840 = sld [smem:[#allocation6 + %s280]]
        %v841 = vstv %s840
        %v842 = vsel %vm839, %v841, %v838
        %vm843 = vcmp.eq.s32.totalorder %v834, 2
        %s844 = sld [smem:[#allocation6 + %s328]]
        %v845 = vstv %s844
        %v846 = vsel %vm843, %v845, %v842
        %vm847 = vcmp.eq.s32.totalorder %v834, 3
        %s848 = sld [smem:[#allocation6 + %s376]]
        %v849 = vstv %s848
        %v850 = vsel %vm847, %v849, %v846
        %vm851 = vcmp.eq.s32.totalorder %v834, 4
        %s852 = sld [smem:[#allocation6 + %s424]]
        %v853 = vstv %s852
        %v854 = vsel %vm851, %v853, %v850
        %vm855 = vcmp.eq.s32.totalorder %v834, 5
        %s856 = sld [smem:[#allocation6 + %s472]]
        %v857 = vstv %s856
        %v858 = vsel %vm855, %v857, %v854
        %vm859 = vcmp.eq.s32.totalorder %v834, 6
        %s860 = sld [smem:[#allocation6 + %s520]]
        %v861 = vstv %s860
        %v862 = vsel %vm859, %v861, %v858
        %vm863 = vcmp.eq.s32.totalorder %v834, 7
        %s864 = sld [smem:[#allocation6 + %s568]]
        %v865 = vstv %s864
        %v866 = vsel %vm863, %v865, %v862
        %vm867 = vcmp.ne.s32.totalorder %v866, 0
        %v868 = vsel %vm867, 1, 0
        %vm869 = vcmp.eq.s32.totalorder %v868, 1
        %v870 = vsel %vm869, %v616, %v832
        %v871 = vsel %vm869, %v617, %v830
        %s872 = sshra.s32 %s229, 3
        %s873 = sand.u32 %s229, 7
        %s874 = smul.u32 %s872, 2
        %s875 = smul.addr %s874, 8
        %s876 = scalar_lea.vmem [#allocation12], %s875
        %877 = vst [vmem:[%s876] sm:$0xff] %v870
        %878 = vst [vmem:[%s876 + $0x8] sm:$0xff] %v871
        // Predicated region
        $region45: #{tpu_custom_call.1} parent=31 // pred_check
          %p879 = pneg %p121
        $region46: #{tpu_custom_call.1} parent=31 // pred_check_branch
          %881 = sbr.rel (%p879) target = $region48
        $region47: #{tpu_custom_call.1} parent=31 // pred_region
          %883 = vsyncadd [#allocation9], 0
          %s884 = sshll.u32 [#allocation12], 4
          %s885 = int_to_ptr.vmem [resolvable:$true] %s884
          %s886 = sshll.u32 %s6, 4
          %s887 = int_to_ptr.hbm [resolvable:$true] %s886
          %892 = dma.vmem_to_hbm [thread:$0]  %s885, 1024, %s887, [#allocation9], 256, 256, 16
        $region48: #{tpu_custom_call.1} parent=31 // pred_fallthru
          _
        // Predicated region
        $region49: #{tpu_custom_call.1} parent=31 // pred_check
          %p893 = pneg %p121
        $region50: #{tpu_custom_call.1} parent=31 // pred_check_branch
          %895 = sbr.rel (%p893) target = $region52
        $region51: #{tpu_custom_call.1} parent=31 // pred_region
          %897 = dma.done [#allocation9], 1024
        $region52: #{tpu_custom_call.1} parent=31 // pred_fallthru
          _
      $region32: #{tpu_custom_call.1} parent=5 // pred_fallthru
        _
      %p898 = scmp.le.s32.totalorder 2, %s35
      // Predicated region
      $region53: #{tpu_custom_call.1} parent=5 // pred_check
        %p899 = pneg %p898
      $region54: #{tpu_custom_call.1} parent=5 // pred_check_branch
        %901 = sbr.rel (%p899) target = $region56
      $region55: #{tpu_custom_call.1} parent=5 // pred_region
        %s902 = ssub.s32 %s35, 2
      $region56: #{tpu_custom_call.1} parent=5 // pred_fallthru
        _
    $region6: #{tpu_custom_call.1} parent=1 // loop_footer
      %s39 = sadd.s32 1, %s35
    $region7: #{tpu_custom_call.1} parent=1 // loop_footer_branch
      %34 = sbr.rel target = $region3
    $region8: #{tpu_custom_call.1} parent=1 // loop_exit
      _
    %903 = vsyncpa [#allocation8], 1
    %s904 = scalar_lea.sflag [#allocation8], 1
    %905 = vsyncpa %s904, 1
    %906 = vsyncpa [#allocation11], 1
    %907 = vsyncpa [#allocation9], 1
    %s908 = scalar_lea.sflag [#allocation9], 1
    %909 = vsyncpa %s908, 1

</llo_original>
